<compile_context>
chip_gen: v6e
topology: v6e:2x2x1
jax: 0.10.0
libtpu: 0.0.40
codegen_flags: <defaults>
</compile_context>

<pallas_src>
import functools

import jax
import jax.numpy as jnp
from jax import lax
from jax.experimental import pallas as pl
from jax.experimental.pallas import tpu as pltpu

BN_EPS = 1e-5
PAD = 128          # lane-dense padded feature width


# ----------------------------- Pallas kernel ---------------------------------

def _explainer_fused_kernel(x_ref, a_ref, onehot_ref,
                            w1_ref, b1_ref, w2_ref, b2_ref,
                            gamma_ref, beta_ref, out_ref,
                            *, num_layers, n_nodes):
    """Fused GIN stack (num_layers x [aggregate, MLP, BN, ReLU]) + per-graph softmax."""
    x = x_ref[...]                       # [N, PAD] f32, zero-padded features
    a = a_ref[...]                       # [N, N]  bf16, A + I (self term folded in)
    inv_n = jnp.float32(1.0 / n_nodes)

    for i in range(num_layers):          # static unroll; weights are tiny and VMEM-resident
        # GINConv (eps = 0): h = (1+eps)*x + sum_{j in N(i)} x_j = (A + I) @ x
        h = jnp.dot(a, x.astype(jnp.bfloat16), preferred_element_type=jnp.float32)
        # nn = Sequential(Linear, ReLU, Linear) -- bf16 MXU inputs, f32 accumulation
        h1 = jnp.dot(h.astype(jnp.bfloat16), w1_ref[i],
                     preferred_element_type=jnp.float32) + b1_ref[i]
        h1 = jnp.maximum(h1, 0.0)
        h2 = jnp.dot(h1.astype(jnp.bfloat16), w2_ref[i],
                     preferred_element_type=jnp.float32) + b2_ref[i]
        # BatchNorm1d (training-mode batch stats, biased variance), one-pass f32 stats.
        mean = jnp.sum(h2, axis=0, keepdims=True) * inv_n
        mean_sq = jnp.sum(h2 * h2, axis=0, keepdims=True) * inv_n
        var = jnp.maximum(mean_sq - mean * mean, 0.0)
        y = (h2 - mean) * lax.rsqrt(var + BN_EPS) * gamma_ref[i] + beta_ref[i]
        # F.relu for every layer except the last
        x = jnp.maximum(y, 0.0) if i != num_layers - 1 else y

    # torch_geometric.utils.softmax(p / 5.0, batch): softmax over nodes within each graph.
    p = x[:, 0:1] * jnp.float32(0.2)                                  # [N, 1] (real column 0)
    bhot = onehot_ref[...]                                            # [N, G] f32
    seg_max = jnp.max(jnp.where(bhot > 0.0, p, -1e30),
                      axis=0, keepdims=True)                          # [1, G]
    node_max = jnp.dot(bhot, seg_max.T,
                       preferred_element_type=jnp.float32)            # [N, 1] (MXU broadcast)
    e = jnp.exp(p - node_max)                                         # [N, 1]
    seg_sum = jnp.dot(bhot.T, e, preferred_element_type=jnp.float32)  # [G, 1]
    node_sum = jnp.dot(bhot, seg_sum,
                       preferred_element_type=jnp.float32)            # [N, 1]
    prob = e / (node_sum + 1e-16)

    # Lane-dense store: broadcast across 128 lanes -> unmasked full-width vst;
    # the wrapper slices column 0 back out.
    out_ref[...] = jnp.broadcast_to(prob, (n_nodes, PAD))


# ----------------------------- parameter setup -------------------------------

def init_explainer_params(key, num_features, dim, num_gc_layers):
    """Deterministic synthetic init matching the layer shapes in Explainer.__init__."""
    params = []
    for i in range(num_gc_layers):
        if i == 0:
            in1, out1, in2, out2 = num_features, dim, dim, dim
        elif i < num_gc_layers - 1:
            in1, out1, in2, out2 = dim, dim, dim, dim
        else:  # last layer: Linear(dim, dim) -> ReLU -> Linear(dim, 1), BatchNorm1d(1)
            in1, out1, in2, out2 = dim, dim, dim, 1
        key, k1, k2, k3, k4 = jax.random.split(key, 5)
        s1 = 1.0 / jnp.sqrt(jnp.float32(in1))
        s2 = 1.0 / jnp.sqrt(jnp.float32(in2))
        params.append(dict(
            w1=jax.random.uniform(k1, (in1, out1), jnp.float32, -s1, s1),
            b1=jax.random.uniform(k2, (1, out1), jnp.float32, -s1, s1),
            w2=jax.random.uniform(k3, (in2, out2), jnp.float32, -s2, s2),
            b2=jax.random.uniform(k4, (1, out2), jnp.float32, -s2, s2),
            gamma=jnp.ones((1, out2), jnp.float32),
            beta=jnp.zeros((1, out2), jnp.float32),
        ))
    return params


def _pad_mat(w):
    out = jnp.zeros((PAD, PAD), jnp.float32)
    return out.at[: w.shape[0], : w.shape[1]].set(w)


def _pad_row(b):
    out = jnp.zeros((1, PAD), jnp.float32)
    return out.at[:, : b.shape[1]].set(b)


# ----------------------------- forward (glue) --------------------------------

def explainer_forward(params, x, edge_index, batch, num_graphs):
    """Default (L=False) forward path of Explainer."""
    n = x.shape[0]
    num_layers = len(params)

    # Dense adjacency with identity folded in (GIN self term): (A + I)[t, s].
    a = (jnp.eye(n, dtype=jnp.float32)
         .at[edge_index[1], edge_index[0]].add(1.0)).astype(jnp.bfloat16)
    # TODO(synk): for large graphs, replace dense A with sparse CSR/edge-list aggregation
    #             (scalar-prefetch row offsets via pltpu.PrefetchScalarGridSpec + gather),
    #             and tile the node axis with cross-tile BN partial sums / megacore split;
    #             the current fused single-block kernel targets moderate N.

    # Lane-dense zero padding of features and weights to 128 columns. Padded columns stay
    # exactly zero through Linear/BN/ReLU (weights, biases, gamma, beta padded with zeros),
    # so BatchNorm statistics of the real columns are unaffected.
    xp = jnp.zeros((n, PAD), jnp.float32).at[:, : x.shape[1]].set(x)
    w1 = jnp.stack([_pad_mat(p["w1"]) for p in params]).astype(jnp.bfloat16)  # [L,PAD,PAD]
    b1 = jnp.stack([_pad_row(p["b1"]) for p in params])                       # [L,1,PAD] f32
    w2 = jnp.stack([_pad_mat(p["w2"]) for p in params]).astype(jnp.bfloat16)
    b2 = jnp.stack([_pad_row(p["b2"]) for p in params])
    gamma = jnp.stack([_pad_row(p["gamma"]) for p in params])
    beta = jnp.stack([_pad_row(p["beta"]) for p in params])
    onehot = jax.nn.one_hot(batch, num_graphs, dtype=jnp.float32)

    vmem = pl.BlockSpec(memory_space=pltpu.MemorySpace.VMEM)
    out = pl.pallas_call(
        functools.partial(_explainer_fused_kernel, num_layers=num_layers, n_nodes=n),
        out_shape=jax.ShapeDtypeStruct((n, PAD), jnp.float32),
        in_specs=[vmem] * 9,
        out_specs=vmem,
        compiler_params=pltpu.CompilerParams(vmem_limit_bytes=64 * 1024 * 1024),
    )(xp, a, onehot, w1, b1, w2, b2, gamma, beta)
    # TODO(synk): L=True branch (node_l = (mask * softmax(p * p.T)) @ p) not implemented;
    #             only the default L=False path is reproduced here.
    return out[:, :1]


# ----------------------------- pure-JAX reference ----------------------------

def reference_forward(params, x, edge_index, batch, num_graphs):
    """Mirrors the kernel's math (bf16 MXU inputs, f32 accumulation, f32 BN/softmax)."""
    n = x.shape[0]
    a = (jnp.eye(n, dtype=jnp.float32)
         .at[edge_index[1], edge_index[0]].add(1.0)).astype(jnp.bfloat16)
    num_layers = len(params)
    for i, p in enumerate(params):
        h = jnp.dot(a, x.astype(jnp.bfloat16), preferred_element_type=jnp.float32)
        h1 = jnp.maximum(
            jnp.dot(h.astype(jnp.bfloat16), p["w1"].astype(jnp.bfloat16),
                    preferred_element_type=jnp.float32) + p["b1"], 0.0)
        h2 = jnp.dot(h1.astype(jnp.bfloat16), p["w2"].astype(jnp.bfloat16),
                     preferred_element_type=jnp.float32) + p["b2"]
        mean = jnp.mean(h2, axis=0, keepdims=True)
        var = jnp.mean((h2 - mean) ** 2, axis=0, keepdims=True)
        y = (h2 - mean) / jnp.sqrt(var + BN_EPS) * p["gamma"] + p["beta"]
        x = jnp.maximum(y, 0.0) if i != num_layers - 1 else y
    onehot = jax.nn.one_hot(batch, num_graphs, dtype=jnp.float32)
    pnorm = x / 5.0
    seg_max = jnp.max(jnp.where(onehot > 0.0, pnorm, -1e30), axis=0, keepdims=True)
    node_max = onehot @ seg_max.T
    e = jnp.exp(pnorm - node_max)
    seg_sum = onehot.T @ e
    node_sum = onehot @ seg_sum
    return e / (node_sum + 1e-16)


# ----------------------------------- main -------------------------------------

if __name__ == "__main__":
    key = jax.random.PRNGKey(0)
    num_features, dim, num_gc_layers = 4, 32, 3
    n_per_graph, num_graphs = 8, 2
    n = n_per_graph * num_graphs

    key, kx, kp = jax.random.split(key, 3)
    x = jax.random.normal(kx, (n, num_features), jnp.float32)

    # Deterministic graph: a bidirectional ring within each of the two graphs.
    src, dst = [], []
    for g in range(num_graphs):
        base = g * n_per_graph
        for v in range(n_per_graph):
            u = base + v
            w = base + (v + 1) % n_per_graph
            src += [u, w]
            dst += [w, u]
    edge_index = jnp.array([src, dst], dtype=jnp.int32)                      # [2, E]
    batch = jnp.repeat(jnp.arange(num_graphs, dtype=jnp.int32), n_per_graph)  # [N]

    params = init_explainer_params(kp, num_features, dim, num_gc_layers)

    out = explainer_forward(params, x, edge_index, batch, num_graphs)
    out = jax.block_until_ready(out)

    ref = reference_forward(params, x, edge_index, batch, num_graphs)
    assert out.shape == (n, 1)
    assert jnp.allclose(out, ref, atol=2e-3, rtol=2e-3), (out, ref)
    # Per-graph probabilities sum to ~1.
    colsum = jax.nn.one_hot(batch, num_graphs, dtype=jnp.float32).T @ out
    assert jnp.allclose(colsum, 1.0, atol=1e-3), colsum

    print("KERNEL_OK")
</pallas_src>

<mosaic_0001>
module attributes {stable_mosaic.version = 11 : i64} {
  func.func @_explainer_fused_kernel(%arg0: memref<16x128xf32, #tpu.memory_space<vmem>>, %arg1: memref<16x16xbf16, #tpu.memory_space<vmem>>, %arg2: memref<16x2xf32, #tpu.memory_space<vmem>>, %arg3: memref<3x128x128xbf16, #tpu.memory_space<vmem>>, %arg4: memref<3x1x128xf32, #tpu.memory_space<vmem>>, %arg5: memref<3x128x128xbf16, #tpu.memory_space<vmem>>, %arg6: memref<3x1x128xf32, #tpu.memory_space<vmem>>, %arg7: memref<3x1x128xf32, #tpu.memory_space<vmem>>, %arg8: memref<3x1x128xf32, #tpu.memory_space<vmem>>, %arg9: memref<16x128xf32, #tpu.memory_space<vmem>>) attributes {dimension_semantics = [], scalar_prefetch = 0 : i64, scratch_operands = 0 : i64, tpu.core_type = #tpu.core_type<tc>} {
    %c0 = arith.constant 0 : index
    %c0_0 = arith.constant 0 : index
    %0 = vector.load %arg0[%c0, %c0_0] : memref<16x128xf32, #tpu.memory_space<vmem>>, vector<16x128xf32>
    %c0_1 = arith.constant 0 : index
    %c0_2 = arith.constant 0 : index
    %1 = vector.load %arg1[%c0_1, %c0_2] : memref<16x16xbf16, #tpu.memory_space<vmem>>, vector<16x16xbf16>
    %2 = arith.truncf %0 : vector<16x128xf32> to vector<16x128xbf16>
    %cst = arith.constant dense<0.000000e+00> : vector<16x128xf32>
    %3 = tpu.matmul %1, %2, %cst {dimension_numbers = #tpu.dot_dimension_numbers<[1], [0], [0], [1], [0, 0, 1, 1], [], []>} : vector<16x16xbf16>, vector<16x128xbf16>, vector<16x128xf32> -> vector<16x128xf32>
    %4 = arith.truncf %3 : vector<16x128xf32> to vector<16x128xbf16>
    %c0_3 = arith.constant 0 : index
    %c0_4 = arith.constant 0 : index
    %c0_5 = arith.constant 0 : index
    %5 = vector.load %arg3[%c0_3, %c0_4, %c0_5] : memref<3x128x128xbf16, #tpu.memory_space<vmem>>, vector<1x128x128xbf16>
    %6 = vector.shape_cast %5 : vector<1x128x128xbf16> to vector<128x128xbf16>
    %cst_6 = arith.constant dense<0.000000e+00> : vector<16x128xf32>
    %7 = tpu.matmul %4, %6, %cst_6 {dimension_numbers = #tpu.dot_dimension_numbers<[1], [0], [0], [1], [0, 0, 1, 1], [], []>} : vector<16x128xbf16>, vector<128x128xbf16>, vector<16x128xf32> -> vector<16x128xf32>
    %c0_7 = arith.constant 0 : index
    %c0_8 = arith.constant 0 : index
    %c0_9 = arith.constant 0 : index
    %8 = vector.load %arg4[%c0_7, %c0_8, %c0_9] : memref<3x1x128xf32, #tpu.memory_space<vmem>>, vector<1x1x128xf32>
    %9 = vector.shape_cast %8 : vector<1x1x128xf32> to vector<1x128xf32>
    %10 = vector.broadcast %9 : vector<1x128xf32> to vector<16x128xf32>
    %11 = arith.addf %7, %10 : vector<16x128xf32>
    %cst_10 = arith.constant 0.000000e+00 : f32
    %12 = vector.broadcast %cst_10 : f32 to vector<16x128xf32>
    %13 = arith.maximumf %11, %12 : vector<16x128xf32>
    %14 = arith.truncf %13 : vector<16x128xf32> to vector<16x128xbf16>
    %c0_11 = arith.constant 0 : index
    %c0_12 = arith.constant 0 : index
    %c0_13 = arith.constant 0 : index
    %15 = vector.load %arg5[%c0_11, %c0_12, %c0_13] : memref<3x128x128xbf16, #tpu.memory_space<vmem>>, vector<1x128x128xbf16>
    %16 = vector.shape_cast %15 : vector<1x128x128xbf16> to vector<128x128xbf16>
    %cst_14 = arith.constant dense<0.000000e+00> : vector<16x128xf32>
    %17 = tpu.matmul %14, %16, %cst_14 {dimension_numbers = #tpu.dot_dimension_numbers<[1], [0], [0], [1], [0, 0, 1, 1], [], []>} : vector<16x128xbf16>, vector<128x128xbf16>, vector<16x128xf32> -> vector<16x128xf32>
    %c0_15 = arith.constant 0 : index
    %c0_16 = arith.constant 0 : index
    %c0_17 = arith.constant 0 : index
    %18 = vector.load %arg6[%c0_15, %c0_16, %c0_17] : memref<3x1x128xf32, #tpu.memory_space<vmem>>, vector<1x1x128xf32>
    %19 = vector.shape_cast %18 : vector<1x1x128xf32> to vector<1x128xf32>
    %20 = vector.broadcast %19 : vector<1x128xf32> to vector<16x128xf32>
    %21 = arith.addf %17, %20 : vector<16x128xf32>
    %cst_18 = arith.constant dense<0.000000e+00> : vector<128xf32>
    %22 = vector.multi_reduction <add>, %21, %cst_18 [0] : vector<16x128xf32> to vector<128xf32>
    %23 = vector.shape_cast %22 : vector<128xf32> to vector<1x128xf32>
    %cst_19 = arith.constant 6.250000e-02 : f32
    %24 = vector.broadcast %cst_19 : f32 to vector<1x128xf32>
    %25 = arith.mulf %23, %24 : vector<1x128xf32>
    %26 = arith.mulf %21, %21 : vector<16x128xf32>
    %cst_20 = arith.constant dense<0.000000e+00> : vector<128xf32>
    %27 = vector.multi_reduction <add>, %26, %cst_20 [0] : vector<16x128xf32> to vector<128xf32>
    %28 = vector.shape_cast %27 : vector<128xf32> to vector<1x128xf32>
    %cst_21 = arith.constant 6.250000e-02 : f32
    %29 = vector.broadcast %cst_21 : f32 to vector<1x128xf32>
    %30 = arith.mulf %28, %29 : vector<1x128xf32>
    %31 = arith.mulf %25, %25 : vector<1x128xf32>
    %32 = arith.subf %30, %31 : vector<1x128xf32>
    %cst_22 = arith.constant 0.000000e+00 : f32
    %33 = vector.broadcast %cst_22 : f32 to vector<1x128xf32>
    %34 = arith.maximumf %32, %33 : vector<1x128xf32>
    %35 = vector.broadcast %25 : vector<1x128xf32> to vector<16x128xf32>
    %36 = arith.subf %21, %35 : vector<16x128xf32>
    %cst_23 = arith.constant 9.99999974E-6 : f32
    %37 = vector.broadcast %cst_23 : f32 to vector<1x128xf32>
    %38 = arith.addf %34, %37 : vector<1x128xf32>
    %39 = math.rsqrt %38 : vector<1x128xf32>
    %40 = vector.broadcast %39 : vector<1x128xf32> to vector<16x128xf32>
    %41 = arith.mulf %36, %40 : vector<16x128xf32>
    %c0_24 = arith.constant 0 : index
    %c0_25 = arith.constant 0 : index
    %c0_26 = arith.constant 0 : index
    %42 = vector.load %arg7[%c0_24, %c0_25, %c0_26] : memref<3x1x128xf32, #tpu.memory_space<vmem>>, vector<1x1x128xf32>
    %43 = vector.shape_cast %42 : vector<1x1x128xf32> to vector<1x128xf32>
    %44 = vector.broadcast %43 : vector<1x128xf32> to vector<16x128xf32>
    %45 = arith.mulf %41, %44 : vector<16x128xf32>
    %c0_27 = arith.constant 0 : index
    %c0_28 = arith.constant 0 : index
    %c0_29 = arith.constant 0 : index
    %46 = vector.load %arg8[%c0_27, %c0_28, %c0_29] : memref<3x1x128xf32, #tpu.memory_space<vmem>>, vector<1x1x128xf32>
    %47 = vector.shape_cast %46 : vector<1x1x128xf32> to vector<1x128xf32>
    %48 = vector.broadcast %47 : vector<1x128xf32> to vector<16x128xf32>
    %49 = arith.addf %45, %48 : vector<16x128xf32>
    %cst_30 = arith.constant 0.000000e+00 : f32
    %50 = vector.broadcast %cst_30 : f32 to vector<16x128xf32>
    %51 = arith.maximumf %49, %50 : vector<16x128xf32>
    %52 = arith.truncf %51 : vector<16x128xf32> to vector<16x128xbf16>
    %cst_31 = arith.constant dense<0.000000e+00> : vector<16x128xf32>
    %53 = tpu.matmul %1, %52, %cst_31 {dimension_numbers = #tpu.dot_dimension_numbers<[1], [0], [0], [1], [0, 0, 1, 1], [], []>} : vector<16x16xbf16>, vector<16x128xbf16>, vector<16x128xf32> -> vector<16x128xf32>
    %54 = arith.truncf %53 : vector<16x128xf32> to vector<16x128xbf16>
    %c1 = arith.constant 1 : index
    %c0_32 = arith.constant 0 : index
    %c0_33 = arith.constant 0 : index
    %55 = vector.load %arg3[%c1, %c0_32, %c0_33] : memref<3x128x128xbf16, #tpu.memory_space<vmem>>, vector<1x128x128xbf16>
    %56 = vector.shape_cast %55 : vector<1x128x128xbf16> to vector<128x128xbf16>
    %cst_34 = arith.constant dense<0.000000e+00> : vector<16x128xf32>
    %57 = tpu.matmul %54, %56, %cst_34 {dimension_numbers = #tpu.dot_dimension_numbers<[1], [0], [0], [1], [0, 0, 1, 1], [], []>} : vector<16x128xbf16>, vector<128x128xbf16>, vector<16x128xf32> -> vector<16x128xf32>
    %c1_35 = arith.constant 1 : index
    %c0_36 = arith.constant 0 : index
    %c0_37 = arith.constant 0 : index
    %58 = vector.load %arg4[%c1_35, %c0_36, %c0_37] : memref<3x1x128xf32, #tpu.memory_space<vmem>>, vector<1x1x128xf32>
    %59 = vector.shape_cast %58 : vector<1x1x128xf32> to vector<1x128xf32>
    %60 = vector.broadcast %59 : vector<1x128xf32> to vector<16x128xf32>
    %61 = arith.addf %57, %60 : vector<16x128xf32>
    %cst_38 = arith.constant 0.000000e+00 : f32
    %62 = vector.broadcast %cst_38 : f32 to vector<16x128xf32>
    %63 = arith.maximumf %61, %62 : vector<16x128xf32>
    %64 = arith.truncf %63 : vector<16x128xf32> to vector<16x128xbf16>
    %c1_39 = arith.constant 1 : index
    %c0_40 = arith.constant 0 : index
    %c0_41 = arith.constant 0 : index
    %65 = vector.load %arg5[%c1_39, %c0_40, %c0_41] : memref<3x128x128xbf16, #tpu.memory_space<vmem>>, vector<1x128x128xbf16>
    %66 = vector.shape_cast %65 : vector<1x128x128xbf16> to vector<128x128xbf16>
    %cst_42 = arith.constant dense<0.000000e+00> : vector<16x128xf32>
    %67 = tpu.matmul %64, %66, %cst_42 {dimension_numbers = #tpu.dot_dimension_numbers<[1], [0], [0], [1], [0, 0, 1, 1], [], []>} : vector<16x128xbf16>, vector<128x128xbf16>, vector<16x128xf32> -> vector<16x128xf32>
    %c1_43 = arith.constant 1 : index
    %c0_44 = arith.constant 0 : index
    %c0_45 = arith.constant 0 : index
    %68 = vector.load %arg6[%c1_43, %c0_44, %c0_45] : memref<3x1x128xf32, #tpu.memory_space<vmem>>, vector<1x1x128xf32>
    %69 = vector.shape_cast %68 : vector<1x1x128xf32> to vector<1x128xf32>
    %70 = vector.broadcast %69 : vector<1x128xf32> to vector<16x128xf32>
    %71 = arith.addf %67, %70 : vector<16x128xf32>
    %cst_46 = arith.constant dense<0.000000e+00> : vector<128xf32>
    %72 = vector.multi_reduction <add>, %71, %cst_46 [0] : vector<16x128xf32> to vector<128xf32>
    %73 = vector.shape_cast %72 : vector<128xf32> to vector<1x128xf32>
    %cst_47 = arith.constant 6.250000e-02 : f32
    %74 = vector.broadcast %cst_47 : f32 to vector<1x128xf32>
    %75 = arith.mulf %73, %74 : vector<1x128xf32>
    %76 = arith.mulf %71, %71 : vector<16x128xf32>
    %cst_48 = arith.constant dense<0.000000e+00> : vector<128xf32>
    %77 = vector.multi_reduction <add>, %76, %cst_48 [0] : vector<16x128xf32> to vector<128xf32>
    %78 = vector.shape_cast %77 : vector<128xf32> to vector<1x128xf32>
    %cst_49 = arith.constant 6.250000e-02 : f32
    %79 = vector.broadcast %cst_49 : f32 to vector<1x128xf32>
    %80 = arith.mulf %78, %79 : vector<1x128xf32>
    %81 = arith.mulf %75, %75 : vector<1x128xf32>
    %82 = arith.subf %80, %81 : vector<1x128xf32>
    %cst_50 = arith.constant 0.000000e+00 : f32
    %83 = vector.broadcast %cst_50 : f32 to vector<1x128xf32>
    %84 = arith.maximumf %82, %83 : vector<1x128xf32>
    %85 = vector.broadcast %75 : vector<1x128xf32> to vector<16x128xf32>
    %86 = arith.subf %71, %85 : vector<16x128xf32>
    %cst_51 = arith.constant 9.99999974E-6 : f32
    %87 = vector.broadcast %cst_51 : f32 to vector<1x128xf32>
    %88 = arith.addf %84, %87 : vector<1x128xf32>
    %89 = math.rsqrt %88 : vector<1x128xf32>
    %90 = vector.broadcast %89 : vector<1x128xf32> to vector<16x128xf32>
    %91 = arith.mulf %86, %90 : vector<16x128xf32>
    %c1_52 = arith.constant 1 : index
    %c0_53 = arith.constant 0 : index
    %c0_54 = arith.constant 0 : index
    %92 = vector.load %arg7[%c1_52, %c0_53, %c0_54] : memref<3x1x128xf32, #tpu.memory_space<vmem>>, vector<1x1x128xf32>
    %93 = vector.shape_cast %92 : vector<1x1x128xf32> to vector<1x128xf32>
    %94 = vector.broadcast %93 : vector<1x128xf32> to vector<16x128xf32>
    %95 = arith.mulf %91, %94 : vector<16x128xf32>
    %c1_55 = arith.constant 1 : index
    %c0_56 = arith.constant 0 : index
    %c0_57 = arith.constant 0 : index
    %96 = vector.load %arg8[%c1_55, %c0_56, %c0_57] : memref<3x1x128xf32, #tpu.memory_space<vmem>>, vector<1x1x128xf32>
    %97 = vector.shape_cast %96 : vector<1x1x128xf32> to vector<1x128xf32>
    %98 = vector.broadcast %97 : vector<1x128xf32> to vector<16x128xf32>
    %99 = arith.addf %95, %98 : vector<16x128xf32>
    %cst_58 = arith.constant 0.000000e+00 : f32
    %100 = vector.broadcast %cst_58 : f32 to vector<16x128xf32>
    %101 = arith.maximumf %99, %100 : vector<16x128xf32>
    %102 = arith.truncf %101 : vector<16x128xf32> to vector<16x128xbf16>
    %cst_59 = arith.constant dense<0.000000e+00> : vector<16x128xf32>
    %103 = tpu.matmul %1, %102, %cst_59 {dimension_numbers = #tpu.dot_dimension_numbers<[1], [0], [0], [1], [0, 0, 1, 1], [], []>} : vector<16x16xbf16>, vector<16x128xbf16>, vector<16x128xf32> -> vector<16x128xf32>
    %104 = arith.truncf %103 : vector<16x128xf32> to vector<16x128xbf16>
    %c2 = arith.constant 2 : index
    %c0_60 = arith.constant 0 : index
    %c0_61 = arith.constant 0 : index
    %105 = vector.load %arg3[%c2, %c0_60, %c0_61] : memref<3x128x128xbf16, #tpu.memory_space<vmem>>, vector<1x128x128xbf16>
    %106 = vector.shape_cast %105 : vector<1x128x128xbf16> to vector<128x128xbf16>
    %cst_62 = arith.constant dense<0.000000e+00> : vector<16x128xf32>
    %107 = tpu.matmul %104, %106, %cst_62 {dimension_numbers = #tpu.dot_dimension_numbers<[1], [0], [0], [1], [0, 0, 1, 1], [], []>} : vector<16x128xbf16>, vector<128x128xbf16>, vector<16x128xf32> -> vector<16x128xf32>
    %c2_63 = arith.constant 2 : index
    %c0_64 = arith.constant 0 : index
    %c0_65 = arith.constant 0 : index
    %108 = vector.load %arg4[%c2_63, %c0_64, %c0_65] : memref<3x1x128xf32, #tpu.memory_space<vmem>>, vector<1x1x128xf32>
    %109 = vector.shape_cast %108 : vector<1x1x128xf32> to vector<1x128xf32>
    %110 = vector.broadcast %109 : vector<1x128xf32> to vector<16x128xf32>
    %111 = arith.addf %107, %110 : vector<16x128xf32>
    %cst_66 = arith.constant 0.000000e+00 : f32
    %112 = vector.broadcast %cst_66 : f32 to vector<16x128xf32>
    %113 = arith.maximumf %111, %112 : vector<16x128xf32>
    %114 = arith.truncf %113 : vector<16x128xf32> to vector<16x128xbf16>
    %c2_67 = arith.constant 2 : index
    %c0_68 = arith.constant 0 : index
    %c0_69 = arith.constant 0 : index
    %115 = vector.load %arg5[%c2_67, %c0_68, %c0_69] : memref<3x128x128xbf16, #tpu.memory_space<vmem>>, vector<1x128x128xbf16>
    %116 = vector.shape_cast %115 : vector<1x128x128xbf16> to vector<128x128xbf16>
    %cst_70 = arith.constant dense<0.000000e+00> : vector<16x128xf32>
    %117 = tpu.matmul %114, %116, %cst_70 {dimension_numbers = #tpu.dot_dimension_numbers<[1], [0], [0], [1], [0, 0, 1, 1], [], []>} : vector<16x128xbf16>, vector<128x128xbf16>, vector<16x128xf32> -> vector<16x128xf32>
    %c2_71 = arith.constant 2 : index
    %c0_72 = arith.constant 0 : index
    %c0_73 = arith.constant 0 : index
    %118 = vector.load %arg6[%c2_71, %c0_72, %c0_73] : memref<3x1x128xf32, #tpu.memory_space<vmem>>, vector<1x1x128xf32>
    %119 = vector.shape_cast %118 : vector<1x1x128xf32> to vector<1x128xf32>
    %120 = vector.broadcast %119 : vector<1x128xf32> to vector<16x128xf32>
    %121 = arith.addf %117, %120 : vector<16x128xf32>
    %cst_74 = arith.constant dense<0.000000e+00> : vector<128xf32>
    %122 = vector.multi_reduction <add>, %121, %cst_74 [0] : vector<16x128xf32> to vector<128xf32>
    %123 = vector.shape_cast %122 : vector<128xf32> to vector<1x128xf32>
    %cst_75 = arith.constant 6.250000e-02 : f32
    %124 = vector.broadcast %cst_75 : f32 to vector<1x128xf32>
    %125 = arith.mulf %123, %124 : vector<1x128xf32>
    %126 = arith.mulf %121, %121 : vector<16x128xf32>
    %cst_76 = arith.constant dense<0.000000e+00> : vector<128xf32>
    %127 = vector.multi_reduction <add>, %126, %cst_76 [0] : vector<16x128xf32> to vector<128xf32>
    %128 = vector.shape_cast %127 : vector<128xf32> to vector<1x128xf32>
    %cst_77 = arith.constant 6.250000e-02 : f32
    %129 = vector.broadcast %cst_77 : f32 to vector<1x128xf32>
    %130 = arith.mulf %128, %129 : vector<1x128xf32>
    %131 = arith.mulf %125, %125 : vector<1x128xf32>
    %132 = arith.subf %130, %131 : vector<1x128xf32>
    %cst_78 = arith.constant 0.000000e+00 : f32
    %133 = vector.broadcast %cst_78 : f32 to vector<1x128xf32>
    %134 = arith.maximumf %132, %133 : vector<1x128xf32>
    %135 = vector.broadcast %125 : vector<1x128xf32> to vector<16x128xf32>
    %136 = arith.subf %121, %135 : vector<16x128xf32>
    %cst_79 = arith.constant 9.99999974E-6 : f32
    %137 = vector.broadcast %cst_79 : f32 to vector<1x128xf32>
    %138 = arith.addf %134, %137 : vector<1x128xf32>
    %139 = math.rsqrt %138 : vector<1x128xf32>
    %140 = vector.broadcast %139 : vector<1x128xf32> to vector<16x128xf32>
    %141 = arith.mulf %136, %140 : vector<16x128xf32>
    %c2_80 = arith.constant 2 : index
    %c0_81 = arith.constant 0 : index
    %c0_82 = arith.constant 0 : index
    %142 = vector.load %arg7[%c2_80, %c0_81, %c0_82] : memref<3x1x128xf32, #tpu.memory_space<vmem>>, vector<1x1x128xf32>
    %143 = vector.shape_cast %142 : vector<1x1x128xf32> to vector<1x128xf32>
    %144 = vector.broadcast %143 : vector<1x128xf32> to vector<16x128xf32>
    %145 = arith.mulf %141, %144 : vector<16x128xf32>
    %c2_83 = arith.constant 2 : index
    %c0_84 = arith.constant 0 : index
    %c0_85 = arith.constant 0 : index
    %146 = vector.load %arg8[%c2_83, %c0_84, %c0_85] : memref<3x1x128xf32, #tpu.memory_space<vmem>>, vector<1x1x128xf32>
    %147 = vector.shape_cast %146 : vector<1x1x128xf32> to vector<1x128xf32>
    %148 = vector.broadcast %147 : vector<1x128xf32> to vector<16x128xf32>
    %149 = arith.addf %145, %148 : vector<16x128xf32>
    %150 = vector.extract_strided_slice %149 {offsets = [0, 0], sizes = [16, 1], strides = [1, 1]} : vector<16x128xf32> to vector<16x1xf32>
    %cst_86 = arith.constant 2.000000e-01 : f32
    %151 = vector.broadcast %cst_86 : f32 to vector<16x1xf32>
    %152 = arith.mulf %150, %151 : vector<16x1xf32>
    %c0_87 = arith.constant 0 : index
    %c0_88 = arith.constant 0 : index
    %153 = vector.load %arg2[%c0_87, %c0_88] : memref<16x2xf32, #tpu.memory_space<vmem>>, vector<16x2xf32>
    %cst_89 = arith.constant 0.000000e+00 : f32
    %154 = vector.broadcast %cst_89 : f32 to vector<16x2xf32>
    %155 = arith.cmpf ogt, %153, %154 : vector<16x2xf32>
    %cst_90 = arith.constant -1.000000e+30 : f32
    %156 = vector.shape_cast %152 : vector<16x1xf32> to vector<16x1xf32>
    %157 = vector.broadcast %156 : vector<16x1xf32> to vector<16x2xf32>
    %158 = vector.broadcast %cst_90 : f32 to vector<16x2xf32>
    %159 = arith.select %155, %157, %158 : vector<16x2xi1>, vector<16x2xf32>
    %cst_91 = arith.constant dense<0xFF800000> : vector<2xf32>
    %160 = vector.multi_reduction <maximumf>, %159, %cst_91 [0] : vector<16x2xf32> to vector<2xf32>
    %161 = vector.shape_cast %160 : vector<2xf32> to vector<1x2xf32>
    %162 = tpu.transpose %161, [1, 0] : vector<1x2xf32> -> vector<2x1xf32>
    %cst_92 = arith.constant dense<0.000000e+00> : vector<16x1xf32>
    %163 = tpu.matmul %153, %162, %cst_92 {dimension_numbers = #tpu.dot_dimension_numbers<[1], [0], [0], [1], [0, 0, 1, 1], [], []>} : vector<16x2xf32>, vector<2x1xf32>, vector<16x1xf32> -> vector<16x1xf32>
    %164 = arith.subf %152, %163 : vector<16x1xf32>
    %165 = math.exp %164 : vector<16x1xf32>
    %166 = tpu.transpose %153, [1, 0] : vector<16x2xf32> -> vector<2x16xf32>
    %cst_93 = arith.constant dense<0.000000e+00> : vector<2x1xf32>
    %167 = tpu.matmul %166, %165, %cst_93 {dimension_numbers = #tpu.dot_dimension_numbers<[1], [0], [0], [1], [0, 0, 1, 1], [], []>} : vector<2x16xf32>, vector<16x1xf32>, vector<2x1xf32> -> vector<2x1xf32>
    %cst_94 = arith.constant dense<0.000000e+00> : vector<16x1xf32>
    %168 = tpu.matmul %153, %167, %cst_94 {dimension_numbers = #tpu.dot_dimension_numbers<[1], [0], [0], [1], [0, 0, 1, 1], [], []>} : vector<16x2xf32>, vector<2x1xf32>, vector<16x1xf32> -> vector<16x1xf32>
    %cst_95 = arith.constant 1.000000e-16 : f32
    %169 = vector.broadcast %cst_95 : f32 to vector<16x1xf32>
    %170 = arith.addf %168, %169 : vector<16x1xf32>
    %171 = arith.divf %165, %170 : vector<16x1xf32>
    %172 = vector.shape_cast %171 : vector<16x1xf32> to vector<16x1xf32>
    %173 = vector.broadcast %172 : vector<16x1xf32> to vector<16x128xf32>
    %c0_96 = arith.constant 0 : index
    %c0_97 = arith.constant 0 : index
    %174 = vector.load %arg9[%c0_96, %c0_97] : memref<16x128xf32, #tpu.memory_space<vmem>>, vector<16x128xf32>
    tpu.vector_store %arg9[%c0_96, %c0_97], %173 {strides = array<i32>} : memref<16x128xf32, #tpu.memory_space<vmem>>, vector<16x128xf32>,
    return
  }
}

</mosaic_0001>

<llo_original>
// kernel: tpu_custom_call.1
$region0: #{tpu_custom_call.1}
  #allocation0 [shape = 'u32[]', space=smem, size = 0x4, offset = 0x4, fixed_abs, tag = 'smem constant byte address 0x4 - core index']
  #allocation1 [shape = 'u32[144,128]{1,0:T(1,128)}', space=vmem, size = 0x12000, scoped, tag = 'internal scratch']
  %s0 = inlined_call_operand.vmem [shape: f32[16,128], index: 0, kind: input, shape index: {}]
  %s1 = inlined_call_operand.hbm [shape: bf16[16,16], index: 1, kind: input, shape index: {}]
  %s2 = inlined_call_operand.vmem [shape: f32[16,2], index: 2, kind: input, shape index: {}]
  %s3 = inlined_call_operand.hbm [shape: bf16[3,128,128], index: 3, kind: input, shape index: {}]
  %s4 = inlined_call_operand.vmem [shape: f32[3,1,128], index: 4, kind: input, shape index: {}]
  %s5 = inlined_call_operand.hbm [shape: bf16[3,128,128], index: 5, kind: input, shape index: {}]
  %s6 = inlined_call_operand.vmem [shape: f32[3,1,128], index: 6, kind: input, shape index: {}]
  %s7 = inlined_call_operand.vmem [shape: f32[3,1,128], index: 7, kind: input, shape index: {}]
  %s8 = inlined_call_operand.vmem [shape: f32[3,1,128], index: 8, kind: input, shape index: {}]
  %s9 = inlined_call_operand.hbm [shape: f32[16,128], index: 9, kind: output, shape index: {}]
  %s10 = sld [smem:[#allocation0]]
  $region58: #{tpu_custom_call.1} parent=0
    _
  %s12 = ssub.s32 1, %s10
  %s13 = scalar_select 0, %s12, %s10
  $region1: #{tpu_custom_call.1} parent=0
    #allocation2 [shape = 'u8[4096]{0}', space=vmem, size = 0x1000, scoped, tag = 'input window, operand 1, single buffered']
    #allocation3 [shape = 's32[1]{0}', space=sflag, size = 0x4, scoped, tag = 'scoped memory for tpu_custom_call.1']
    #allocation4 [shape = 's32[1]{0}', space=sflag, size = 0x4, scoped, tag = 'scoped memory for tpu_custom_call.1']
    #allocation5 [shape = 'u8[98304]{0}', space=vmem, size = 0x18000, scoped, tag = 'input window, operand 3, single buffered']
    #allocation6 [shape = 's32[1]{0}', space=sflag, size = 0x4, scoped, tag = 'scoped memory for tpu_custom_call.1']
    #allocation7 [shape = 'u8[98304]{0}', space=vmem, size = 0x18000, scoped, tag = 'input window, operand 5, single buffered']
    #allocation8 [shape = 'u8[8192]{0}', space=vmem, size = 0x2000, scoped, tag = 'output window, operand 0, single buffered']
    %14 = vsyncpa [#allocation3], 0
    %15 = vsyncpa [#allocation6], 0
    %16 = vsyncpa [#allocation4], 0
    // Predicated region
    $region2: #{tpu_custom_call.1} parent=1 // pred_check
      _
    $region3: #{tpu_custom_call.1} parent=1 // pred_check_branch
      %18 = sbr.rel (0) target = $region5
    $region4: #{tpu_custom_call.1} parent=1 // pred_region
      _
    $region5: #{tpu_custom_call.1} parent=1 // pred_fallthru
      _
    // Predicated region
    $region6: #{tpu_custom_call.1} parent=1 // pred_check
      _
    $region7: #{tpu_custom_call.1} parent=1 // pred_check_branch
      %20 = sbr.rel (0) target = $region9
    $region8: #{tpu_custom_call.1} parent=1 // pred_region
      %s22 = ssub.s32 128, 128
      %23 = vsyncadd [#allocation3], %s22
      %s24 = sshll.u32 [#allocation2], 4
      %s25 = int_to_ptr.vmem [resolvable:$true] %s24
      %30 = dma.hbm_to_vmem [thread:$0]  %s1, 128, %s25, [#allocation3], 64, 64, 4
    $region9: #{tpu_custom_call.1} parent=1 // pred_fallthru
      _
    // Predicated region
    $region10: #{tpu_custom_call.1} parent=1 // pred_check
      _
    $region11: #{tpu_custom_call.1} parent=1 // pred_check_branch
      %32 = sbr.rel (0) target = $region13
    $region12: #{tpu_custom_call.1} parent=1 // pred_region
      _
    $region13: #{tpu_custom_call.1} parent=1 // pred_fallthru
      _
    // Predicated region
    $region14: #{tpu_custom_call.1} parent=1 // pred_check
      _
    $region15: #{tpu_custom_call.1} parent=1 // pred_check_branch
      %34 = sbr.rel (0) target = $region17
    $region16: #{tpu_custom_call.1} parent=1 // pred_region
      %s36 = ssub.s32 3072, 3072
      %37 = vsyncadd [#allocation6], %s36
      %s38 = sshll.u32 [#allocation5], 4
      %s39 = int_to_ptr.vmem [resolvable:$true] %s38
      %44 = dma.hbm_to_vmem [thread:$0]  %s3, 3072, %s39, [#allocation6], 64, 64, 4
    $region17: #{tpu_custom_call.1} parent=1 // pred_fallthru
      _
    // Predicated region
    $region18: #{tpu_custom_call.1} parent=1 // pred_check
      _
    $region19: #{tpu_custom_call.1} parent=1 // pred_check_branch
      %46 = sbr.rel (0) target = $region21
    $region20: #{tpu_custom_call.1} parent=1 // pred_region
      _
    $region21: #{tpu_custom_call.1} parent=1 // pred_fallthru
      _
    // Predicated region
    $region22: #{tpu_custom_call.1} parent=1 // pred_check
      _
    $region23: #{tpu_custom_call.1} parent=1 // pred_check_branch
      %48 = sbr.rel (0) target = $region25
    $region24: #{tpu_custom_call.1} parent=1 // pred_region
      %s50 = ssub.s32 3072, 3072
      %51 = vsyncadd [#allocation6], %s50
      %s52 = sshll.u32 [#allocation7], 4
      %s53 = int_to_ptr.vmem [resolvable:$true] %s52
      %58 = dma.hbm_to_vmem [thread:$0]  %s5, 3072, %s53, [#allocation6], 64, 64, 4
    $region25: #{tpu_custom_call.1} parent=1 // pred_fallthru
      _
    // Predicated region
    $region26: #{tpu_custom_call.1} parent=1 // pred_check
      _
    $region27: #{tpu_custom_call.1} parent=1 // pred_check_branch
      %60 = sbr.rel (0) target = $region29
    $region28: #{tpu_custom_call.1} parent=1 // pred_region
      _
    $region29: #{tpu_custom_call.1} parent=1 // pred_fallthru
      _
    // Predicated region
    $region30: #{tpu_custom_call.1} parent=1 // pred_check
      _
    $region31: #{tpu_custom_call.1} parent=1 // pred_check_branch
      %62 = sbr.rel (0) target = $region33
    $region32: #{tpu_custom_call.1} parent=1 // pred_region
      _
    $region33: #{tpu_custom_call.1} parent=1 // pred_fallthru
      _
    // Predicated region
    $region34: #{tpu_custom_call.1} parent=1 // pred_check
      _
    $region35: #{tpu_custom_call.1} parent=1 // pred_check_branch
      %64 = sbr.rel (0) target = $region37
    $region36: #{tpu_custom_call.1} parent=1 // pred_region
      _
    $region37: #{tpu_custom_call.1} parent=1 // pred_fallthru
      _
    // Predicated region
    $region38: #{tpu_custom_call.1} parent=1 // pred_check
      _
    $region39: #{tpu_custom_call.1} parent=1 // pred_check_branch
      %66 = sbr.rel (0) target = $region41
    $region40: #{tpu_custom_call.1} parent=1 // pred_region
      %67 = dma.done [#allocation3], 128
    $region41: #{tpu_custom_call.1} parent=1 // pred_fallthru
      _
    // Predicated region
    $region42: #{tpu_custom_call.1} parent=1 // pred_check
      _
    $region43: #{tpu_custom_call.1} parent=1 // pred_check_branch
      %69 = sbr.rel (0) target = $region45
    $region44: #{tpu_custom_call.1} parent=1 // pred_region
      %70 = dma.done [#allocation6], 3072
    $region45: #{tpu_custom_call.1} parent=1 // pred_fallthru
      _
    // Predicated region
    $region46: #{tpu_custom_call.1} parent=1 // pred_check
      _
    $region47: #{tpu_custom_call.1} parent=1 // pred_check_branch
      %72 = sbr.rel (0) target = $region49
    $region48: #{tpu_custom_call.1} parent=1 // pred_region
      %73 = dma.done [#allocation6], 3072
    $region49: #{tpu_custom_call.1} parent=1 // pred_fallthru
      _
    %v75 = vld [vmem:[%s0] sm:$0xff]
    %v76 = vld [vmem:[%s0 + $0x8] sm:$0xff]
    %v77 = vld [vmem:[#allocation2] sm:$0xf]
    %v78 = vld [vmem:[#allocation2 + $0x4] sm:$0xf]
    %v79 = vpack.c.bf16 %v76, %v75
    %v82 = vunpack.c.l.b16 %v77
    %v83 = vunpack.c.l.b16 %v78
    %v84 = vpack.c.b16 %v83, %v82
    %vm85 = vcmask 130048
    %v87 = vsel %vm85, %v84, 0
    %89 = vmatprep.subr.bf16.mxu0 0
    %90 = vmatpush1.bf16.msra.mxu0 0
    %91 = vmatprep.subr.bf16.mxu0 0
    %92 = vmatpush1.bf16.msra.mxu0 0
    %93 = vmatprep.subr.bf16.mxu0 0
    %94 = vmatpush1.bf16.msra.mxu0 0
    %95 = vmatprep.subr.bf16.mxu0 0
    %96 = vmatpush1.bf16.msra.mxu0 0
    %97 = vmatprep.subr.bf16.mxu0 0
    %98 = vmatpush1.bf16.msra.mxu0 0
    %99 = vmatprep.subr.bf16.mxu0 0
    %100 = vmatpush1.bf16.msra.mxu0 0
    %101 = vmatprep.subr.bf16.mxu0 0
    %102 = vmatpush1.bf16.msra.mxu0 0
    %103 = vmatprep.subr.bf16.mxu0 0
    %104 = vmatpush1.bf16.msra.mxu0 %v79
    %105 = vmatprep.subr.bf16.mxu0 0
    %106 = vmatpush2.bf16.msra.mxu0 0
    %107 = vmatprep.subr.bf16.mxu0 0
    %108 = vmatpush2.bf16.msra.mxu0 0
    %109 = vmatprep.subr.bf16.mxu0 0
    %110 = vmatpush2.bf16.msra.mxu0 0
    %111 = vmatprep.subr.bf16.mxu0 0
    %112 = vmatpush2.bf16.msra.mxu0 0
    %113 = vmatprep.subr.bf16.mxu0 0
    %114 = vmatpush2.bf16.msra.mxu0 0
    %115 = vmatprep.subr.bf16.mxu0 0
    %116 = vmatpush2.bf16.msra.mxu0 0
    %117 = vmatprep.subr.bf16.mxu0 0
    %118 = vmatpush2.bf16.msra.mxu0 0
    %119 = vmatprep.subr.bf16.mxu0 0
    %120 = vmatpush2.bf16.msra.mxu0 0
    %121 = vmatprep.mubr.bf16.mxu0 0
    %122 = vmatmul.mubr.bf16.gmra.mxu0 %v87
    %v123 = vpop.f32.mrf.mxu0
    %v124 = vadd.f32 0.0, %v123
    %v125 = vpop.f32.mrf.mxu0
    %v126 = vpop.f32.mrf.mxu0
    %v127 = vadd.f32 0.0, %v126
    %v128 = vpop.f32.mrf.mxu0
    %129 = vdwg.mxu0
    %v130 = vpack.c.bf16 %v127, %v124
    %v131 = vld [vmem:[#allocation5] sm:$0xf]
    %v132 = vld [vmem:[#allocation5 + $0x4] sm:$0xf]
    %v133 = vld [vmem:[#allocation5 + $0x8] sm:$0xf]
    %v134 = vld [vmem:[#allocation5 + $0xc] sm:$0xf]
    %v135 = vld [vmem:[#allocation5 + $0x10] sm:$0xf]
    %v136 = vld [vmem:[#allocation5 + $0x14] sm:$0xf]
    %v137 = vld [vmem:[#allocation5 + $0x18] sm:$0xf]
    %v138 = vld [vmem:[#allocation5 + $0x1c] sm:$0xf]
    %v139 = vld [vmem:[#allocation5 + $0x20] sm:$0xf]
    %v140 = vld [vmem:[#allocation5 + $0x24] sm:$0xf]
    %v141 = vld [vmem:[#allocation5 + $0x28] sm:$0xf]
    %v142 = vld [vmem:[#allocation5 + $0x2c] sm:$0xf]
    %v143 = vld [vmem:[#allocation5 + $0x30] sm:$0xf]
    %v144 = vld [vmem:[#allocation5 + $0x34] sm:$0xf]
    %v145 = vld [vmem:[#allocation5 + $0x38] sm:$0xf]
    %v146 = vld [vmem:[#allocation5 + $0x3c] sm:$0xf]
    %v147 = vld [vmem:[%s4] sm:$0x1]
    %v149 = vlaneseq
    %v150 = vshrl.u32 %v149, 7
    %v151 = vsub.s32 0, %v150
    %v152 = vrot.slane %v147, %v151
    %v170 = vunpack.c.l.b16 %v131
    %v171 = vunpack.c.l.b16 %v132
    %v172 = vunpack.c.l.b16 %v133
    %v173 = vunpack.c.l.b16 %v134
    %v174 = vunpack.c.l.b16 %v135
    %v175 = vunpack.c.l.b16 %v136
    %v176 = vunpack.c.l.b16 %v137
    %v177 = vunpack.c.l.b16 %v138
    %v178 = vunpack.c.l.b16 %v139
    %v179 = vunpack.c.l.b16 %v140
    %v180 = vunpack.c.l.b16 %v141
    %v181 = vunpack.c.l.b16 %v142
    %v182 = vunpack.c.l.b16 %v143
    %v183 = vunpack.c.l.b16 %v144
    %v184 = vunpack.c.l.b16 %v145
    %v185 = vunpack.c.l.b16 %v146
    %v186 = vpack.c.b16 %v171, %v170
    %v187 = vpack.c.b16 %v173, %v172
    %v188 = vpack.c.b16 %v175, %v174
    %v189 = vpack.c.b16 %v177, %v176
    %v190 = vpack.c.b16 %v179, %v178
    %v191 = vpack.c.b16 %v181, %v180
    %v192 = vpack.c.b16 %v183, %v182
    %v193 = vpack.c.b16 %v185, %v184
    %202 = vmatprep.subr.bf16.mxu0 0
    %203 = vmatpush1.bf16.msra.mxu0 %v193
    %204 = vmatprep.subr.bf16.mxu0 0
    %205 = vmatpush1.bf16.msra.mxu0 %v192
    %206 = vmatprep.subr.bf16.mxu0 0
    %207 = vmatpush1.bf16.msra.mxu0 %v191
    %208 = vmatprep.subr.bf16.mxu0 0
    %209 = vmatpush1.bf16.msra.mxu0 %v190
    %210 = vmatprep.subr.bf16.mxu0 0
    %211 = vmatpush1.bf16.msra.mxu0 %v189
    %212 = vmatprep.subr.bf16.mxu0 0
    %213 = vmatpush1.bf16.msra.mxu0 %v188
    %214 = vmatprep.subr.bf16.mxu0 0
    %215 = vmatpush1.bf16.msra.mxu0 %v187
    %216 = vmatprep.subr.bf16.mxu0 0
    %217 = vmatpush1.bf16.msra.mxu0 %v186
    %218 = vmatprep.subr.bf16.mxu0 0
    %219 = vmatpush2.bf16.msra.mxu0 0
    %220 = vmatprep.subr.bf16.mxu0 0
    %221 = vmatpush2.bf16.msra.mxu0 0
    %222 = vmatprep.subr.bf16.mxu0 0
    %223 = vmatpush2.bf16.msra.mxu0 0
    %224 = vmatprep.subr.bf16.mxu0 0
    %225 = vmatpush2.bf16.msra.mxu0 0
    %226 = vmatprep.subr.bf16.mxu0 0
    %227 = vmatpush2.bf16.msra.mxu0 0
    %228 = vmatprep.subr.bf16.mxu0 0
    %229 = vmatpush2.bf16.msra.mxu0 0
    %230 = vmatprep.subr.bf16.mxu0 0
    %231 = vmatpush2.bf16.msra.mxu0 0
    %232 = vmatprep.subr.bf16.mxu0 0
    %233 = vmatpush2.bf16.msra.mxu0 0
    %234 = vmatprep.mubr.bf16.mxu0 0
    %235 = vmatmul.mubr.bf16.gmra.mxu0 %v130
    %v236 = vpop.f32.mrf.mxu0
    %v237 = vadd.f32 %v152, %v236
    %v238 = vpop.f32.mrf.mxu0
    %v239 = vpop.f32.mrf.mxu0
    %v240 = vadd.f32 %v152, %v239
    %v241 = vpop.f32.mrf.mxu0
    %242 = vdwg.mxu0
    %v243 = vmax.f32 %v237, 0.0
    %v244 = vmax.f32 %v240, 0.0
    %v245 = vpack.c.bf16 %v244, %v243
    %v246 = vld [vmem:[#allocation7] sm:$0xf]
    %v247 = vld [vmem:[#allocation7 + $0x4] sm:$0xf]
    %v248 = vld [vmem:[#allocation7 + $0x8] sm:$0xf]
    %v249 = vld [vmem:[#allocation7 + $0xc] sm:$0xf]
    %v250 = vld [vmem:[#allocation7 + $0x10] sm:$0xf]
    %v251 = vld [vmem:[#allocation7 + $0x14] sm:$0xf]
    %v252 = vld [vmem:[#allocation7 + $0x18] sm:$0xf]
    %v253 = vld [vmem:[#allocation7 + $0x1c] sm:$0xf]
    %v254 = vld [vmem:[#allocation7 + $0x20] sm:$0xf]
    %v255 = vld [vmem:[#allocation7 + $0x24] sm:$0xf]
    %v256 = vld [vmem:[#allocation7 + $0x28] sm:$0xf]
    %v257 = vld [vmem:[#allocation7 + $0x2c] sm:$0xf]
    %v258 = vld [vmem:[#allocation7 + $0x30] sm:$0xf]
    %v259 = vld [vmem:[#allocation7 + $0x34] sm:$0xf]
    %v260 = vld [vmem:[#allocation7 + $0x38] sm:$0xf]
    %v261 = vld [vmem:[#allocation7 + $0x3c] sm:$0xf]
    %v262 = vld [vmem:[%s6] sm:$0x1]
    %v264 = vlaneseq
    %v265 = vshrl.u32 %v264, 7
    %v266 = vsub.s32 0, %v265
    %v267 = vrot.slane %v262, %v266
    %v285 = vunpack.c.l.b16 %v246
    %v286 = vunpack.c.l.b16 %v247
    %v287 = vunpack.c.l.b16 %v248
    %v288 = vunpack.c.l.b16 %v249
    %v289 = vunpack.c.l.b16 %v250
    %v290 = vunpack.c.l.b16 %v251
    %v291 = vunpack.c.l.b16 %v252
    %v292 = vunpack.c.l.b16 %v253
    %v293 = vunpack.c.l.b16 %v254
    %v294 = vunpack.c.l.b16 %v255
    %v295 = vunpack.c.l.b16 %v256
    %v296 = vunpack.c.l.b16 %v257
    %v297 = vunpack.c.l.b16 %v258
    %v298 = vunpack.c.l.b16 %v259
    %v299 = vunpack.c.l.b16 %v260
    %v300 = vunpack.c.l.b16 %v261
    %v301 = vpack.c.b16 %v286, %v285
    %v302 = vpack.c.b16 %v288, %v287
    %v303 = vpack.c.b16 %v290, %v289
    %v304 = vpack.c.b16 %v292, %v291
    %v305 = vpack.c.b16 %v294, %v293
    %v306 = vpack.c.b16 %v296, %v295
    %v307 = vpack.c.b16 %v298, %v297
    %v308 = vpack.c.b16 %v300, %v299
    %317 = vmatprep.subr.bf16.mxu0 0
    %318 = vmatpush1.bf16.msra.mxu0 %v308
    %319 = vmatprep.subr.bf16.mxu0 0
    %320 = vmatpush1.bf16.msra.mxu0 %v307
    %321 = vmatprep.subr.bf16.mxu0 0
    %322 = vmatpush1.bf16.msra.mxu0 %v306
    %323 = vmatprep.subr.bf16.mxu0 0
    %324 = vmatpush1.bf16.msra.mxu0 %v305
    %325 = vmatprep.subr.bf16.mxu0 0
    %326 = vmatpush1.bf16.msra.mxu0 %v304
    %327 = vmatprep.subr.bf16.mxu0 0
    %328 = vmatpush1.bf16.msra.mxu0 %v303
    %329 = vmatprep.subr.bf16.mxu0 0
    %330 = vmatpush1.bf16.msra.mxu0 %v302
    %331 = vmatprep.subr.bf16.mxu0 0
    %332 = vmatpush1.bf16.msra.mxu0 %v301
    %333 = vmatprep.subr.bf16.mxu0 0
    %334 = vmatpush2.bf16.msra.mxu0 0
    %335 = vmatprep.subr.bf16.mxu0 0
    %336 = vmatpush2.bf16.msra.mxu0 0
    %337 = vmatprep.subr.bf16.mxu0 0
    %338 = vmatpush2.bf16.msra.mxu0 0
    %339 = vmatprep.subr.bf16.mxu0 0
    %340 = vmatpush2.bf16.msra.mxu0 0
    %341 = vmatprep.subr.bf16.mxu0 0
    %342 = vmatpush2.bf16.msra.mxu0 0
    %343 = vmatprep.subr.bf16.mxu0 0
    %344 = vmatpush2.bf16.msra.mxu0 0
    %345 = vmatprep.subr.bf16.mxu0 0
    %346 = vmatpush2.bf16.msra.mxu0 0
    %347 = vmatprep.subr.bf16.mxu0 0
    %348 = vmatpush2.bf16.msra.mxu0 0
    %349 = vmatprep.mubr.bf16.mxu0 0
    %350 = vmatmul.mubr.bf16.gmra.mxu0 %v245
    %v351 = vpop.f32.mrf.mxu0
    %v352 = vadd.f32 %v267, %v351
    %v353 = vpop.f32.mrf.mxu0
    %v354 = vpop.f32.mrf.mxu0
    %v355 = vadd.f32 %v267, %v354
    %v356 = vpop.f32.mrf.mxu0
    %357 = vdwg.mxu0
    %v358 = vadd.f32 %v352, %v355
    %v359 = vrot.slane %v358, 4
    %v360 = vadd.f32 %v358, %v359
    %v361 = vrot.slane %v360, 2
    %v362 = vadd.f32 %v360, %v361
    %v363 = vrot.slane %v362, 1
    %v364 = vadd.f32 %v362, %v363
    %v365 = vmul.f32 %v364, 0.0625
    %v366 = vmul.f32 %v352, %v352
    %v367 = vmul.f32 %v355, %v355
    %v368 = vadd.f32 %v366, %v367
    %v369 = vrot.slane %v368, 4
    %v370 = vadd.f32 %v368, %v369
    %v371 = vrot.slane %v370, 2
    %v372 = vadd.f32 %v370, %v371
    %v373 = vrot.slane %v372, 1
    %v374 = vadd.f32 %v372, %v373
    %v375 = vmul.f32 %v374, 0.0625
    %v376 = vmul.f32 %v365, %v365
    %v377 = vsub.f32 %v375, %v376
    %v378 = vmax.f32 %v377, 0.0
    %v379 = vsub.f32 %v352, %v365
    %v380 = vsub.f32 %v355, %v365
    %v381 = vadd.f32 %v378, 1e-05
    %v382 = vrsqrt.pop %v381
    %v383 = vmul.f32 %v379, %v382
    %v384 = vmul.f32 %v380, %v382
    %v385 = vld [vmem:[%s7] sm:$0x1]
    %v387 = vlaneseq
    %v388 = vshrl.u32 %v387, 7
    %v389 = vsub.s32 0, %v388
    %v390 = vrot.slane %v385, %v389
    %v392 = vmul.f32 %v383, %v390
    %v393 = vmul.f32 %v384, %v390
    %v394 = vld [vmem:[%s8] sm:$0x1]
    %v396 = vlaneseq
    %v397 = vshrl.u32 %v396, 7
    %v398 = vsub.s32 0, %v397
    %v399 = vrot.slane %v394, %v398
    %v401 = vadd.f32 %v392, %v399
    %v402 = vadd.f32 %v393, %v399
    %v403 = vmax.f32 %v401, 0.0
    %v404 = vmax.f32 %v402, 0.0
    %v405 = vpack.c.bf16 %v404, %v403
    %406 = vmatprep.subr.bf16.mxu0 0
    %407 = vmatpush1.bf16.msra.mxu0 0
    %408 = vmatprep.subr.bf16.mxu0 0
    %409 = vmatpush1.bf16.msra.mxu0 0
    %410 = vmatprep.subr.bf16.mxu0 0
    %411 = vmatpush1.bf16.msra.mxu0 0
    %412 = vmatprep.subr.bf16.mxu0 0
    %413 = vmatpush1.bf16.msra.mxu0 0
    %414 = vmatprep.subr.bf16.mxu0 0
    %415 = vmatpush1.bf16.msra.mxu0 0
    %416 = vmatprep.subr.bf16.mxu0 0
    %417 = vmatpush1.bf16.msra.mxu0 0
    %418 = vmatprep.subr.bf16.mxu0 0
    %419 = vmatpush1.bf16.msra.mxu0 0
    %420 = vmatprep.subr.bf16.mxu0 0
    %421 = vmatpush1.bf16.msra.mxu0 %v405
    %422 = vmatprep.subr.bf16.mxu0 0
    %423 = vmatpush2.bf16.msra.mxu0 0
    %424 = vmatprep.subr.bf16.mxu0 0
    %425 = vmatpush2.bf16.msra.mxu0 0
    %426 = vmatprep.subr.bf16.mxu0 0
    %427 = vmatpush2.bf16.msra.mxu0 0
    %428 = vmatprep.subr.bf16.mxu0 0
    %429 = vmatpush2.bf16.msra.mxu0 0
    %430 = vmatprep.subr.bf16.mxu0 0
    %431 = vmatpush2.bf16.msra.mxu0 0
    %432 = vmatprep.subr.bf16.mxu0 0
    %433 = vmatpush2.bf16.msra.mxu0 0
    %434 = vmatprep.subr.bf16.mxu0 0
    %435 = vmatpush2.bf16.msra.mxu0 0
    %436 = vmatprep.subr.bf16.mxu0 0
    %437 = vmatpush2.bf16.msra.mxu0 0
    %438 = vmatprep.mubr.bf16.mxu0 0
    %439 = vmatmul.mubr.bf16.gmra.mxu0 %v87
    %v440 = vpop.f32.mrf.mxu0
    %v441 = vadd.f32 0.0, %v440
    %v442 = vpop.f32.mrf.mxu0
    %v443 = vpop.f32.mrf.mxu0
    %v444 = vadd.f32 0.0, %v443
    %v445 = vpop.f32.mrf.mxu0
    %446 = vdwg.mxu0
    %v447 = vpack.c.bf16 %v444, %v441
    %s448 = scalar_lea.vmem [#allocation5], 64
    %v449 = vld [vmem:[%s448] sm:$0xf]
    %v450 = vld [vmem:[%s448 + $0x4] sm:$0xf]
    %v451 = vld [vmem:[%s448 + $0x8] sm:$0xf]
    %v452 = vld [vmem:[%s448 + $0xc] sm:$0xf]
    %v453 = vld [vmem:[%s448 + $0x10] sm:$0xf]
    %v454 = vld [vmem:[%s448 + $0x14] sm:$0xf]
    %v455 = vld [vmem:[%s448 + $0x18] sm:$0xf]
    %v456 = vld [vmem:[%s448 + $0x1c] sm:$0xf]
    %v457 = vld [vmem:[%s448 + $0x20] sm:$0xf]
    %v458 = vld [vmem:[%s448 + $0x24] sm:$0xf]
    %v459 = vld [vmem:[%s448 + $0x28] sm:$0xf]
    %v460 = vld [vmem:[%s448 + $0x2c] sm:$0xf]
    %v461 = vld [vmem:[%s448 + $0x30] sm:$0xf]
    %v462 = vld [vmem:[%s448 + $0x34] sm:$0xf]
    %v463 = vld [vmem:[%s448 + $0x38] sm:$0xf]
    %v464 = vld [vmem:[%s448 + $0x3c] sm:$0xf]
    %s465 = scalar_lea.vmem %s4, 1
    %v466 = vld [vmem:[%s465] sm:$0x1]
    %v468 = vlaneseq
    %v469 = vshrl.u32 %v468, 7
    %v470 = vsub.s32 0, %v469
    %v471 = vrot.slane %v466, %v470
    %v489 = vunpack.c.l.b16 %v449
    %v490 = vunpack.c.l.b16 %v450
    %v491 = vunpack.c.l.b16 %v451
    %v492 = vunpack.c.l.b16 %v452
    %v493 = vunpack.c.l.b16 %v453
    %v494 = vunpack.c.l.b16 %v454
    %v495 = vunpack.c.l.b16 %v455
    %v496 = vunpack.c.l.b16 %v456
    %v497 = vunpack.c.l.b16 %v457
    %v498 = vunpack.c.l.b16 %v458
    %v499 = vunpack.c.l.b16 %v459
    %v500 = vunpack.c.l.b16 %v460
    %v501 = vunpack.c.l.b16 %v461
    %v502 = vunpack.c.l.b16 %v462
    %v503 = vunpack.c.l.b16 %v463
    %v504 = vunpack.c.l.b16 %v464
    %v505 = vpack.c.b16 %v490, %v489
    %v506 = vpack.c.b16 %v492, %v491
    %v507 = vpack.c.b16 %v494, %v493
    %v508 = vpack.c.b16 %v496, %v495
    %v509 = vpack.c.b16 %v498, %v497
    %v510 = vpack.c.b16 %v500, %v499
    %v511 = vpack.c.b16 %v502, %v501
    %v512 = vpack.c.b16 %v504, %v503
    %521 = vmatprep.subr.bf16.mxu0 0
    %522 = vmatpush1.bf16.msra.mxu0 %v512
    %523 = vmatprep.subr.bf16.mxu0 0
    %524 = vmatpush1.bf16.msra.mxu0 %v511
    %525 = vmatprep.subr.bf16.mxu0 0
    %526 = vmatpush1.bf16.msra.mxu0 %v510
    %527 = vmatprep.subr.bf16.mxu0 0
    %528 = vmatpush1.bf16.msra.mxu0 %v509
    %529 = vmatprep.subr.bf16.mxu0 0
    %530 = vmatpush1.bf16.msra.mxu0 %v508
    %531 = vmatprep.subr.bf16.mxu0 0
    %532 = vmatpush1.bf16.msra.mxu0 %v507
    %533 = vmatprep.subr.bf16.mxu0 0
    %534 = vmatpush1.bf16.msra.mxu0 %v506
    %535 = vmatprep.subr.bf16.mxu0 0
    %536 = vmatpush1.bf16.msra.mxu0 %v505
    %537 = vmatprep.subr.bf16.mxu0 0
    %538 = vmatpush2.bf16.msra.mxu0 0
    %539 = vmatprep.subr.bf16.mxu0 0
    %540 = vmatpush2.bf16.msra.mxu0 0
    %541 = vmatprep.subr.bf16.mxu0 0
    %542 = vmatpush2.bf16.msra.mxu0 0
    %543 = vmatprep.subr.bf16.mxu0 0
    %544 = vmatpush2.bf16.msra.mxu0 0
    %545 = vmatprep.subr.bf16.mxu0 0
    %546 = vmatpush2.bf16.msra.mxu0 0
    %547 = vmatprep.subr.bf16.mxu0 0
    %548 = vmatpush2.bf16.msra.mxu0 0
    %549 = vmatprep.subr.bf16.mxu0 0
    %550 = vmatpush2.bf16.msra.mxu0 0
    %551 = vmatprep.subr.bf16.mxu0 0
    %552 = vmatpush2.bf16.msra.mxu0 0
    %553 = vmatprep.mubr.bf16.mxu0 0
    %554 = vmatmul.mubr.bf16.gmra.mxu0 %v447
    %v555 = vpop.f32.mrf.mxu0
    %v556 = vadd.f32 %v471, %v555
    %v557 = vpop.f32.mrf.mxu0
    %v558 = vpop.f32.mrf.mxu0
    %v559 = vadd.f32 %v471, %v558
    %v560 = vpop.f32.mrf.mxu0
    %561 = vdwg.mxu0
    %v562 = vmax.f32 %v556, 0.0
    %v563 = vmax.f32 %v559, 0.0
    %v564 = vpack.c.bf16 %v563, %v562
    %s565 = scalar_lea.vmem [#allocation7], 64
    %v566 = vld [vmem:[%s565] sm:$0xf]
    %v567 = vld [vmem:[%s565 + $0x4] sm:$0xf]
    %v568 = vld [vmem:[%s565 + $0x8] sm:$0xf]
    %v569 = vld [vmem:[%s565 + $0xc] sm:$0xf]
    %v570 = vld [vmem:[%s565 + $0x10] sm:$0xf]
    %v571 = vld [vmem:[%s565 + $0x14] sm:$0xf]
    %v572 = vld [vmem:[%s565 + $0x18] sm:$0xf]
    %v573 = vld [vmem:[%s565 + $0x1c] sm:$0xf]
    %v574 = vld [vmem:[%s565 + $0x20] sm:$0xf]
    %v575 = vld [vmem:[%s565 + $0x24] sm:$0xf]
    %v576 = vld [vmem:[%s565 + $0x28] sm:$0xf]
    %v577 = vld [vmem:[%s565 + $0x2c] sm:$0xf]
    %v578 = vld [vmem:[%s565 + $0x30] sm:$0xf]
    %v579 = vld [vmem:[%s565 + $0x34] sm:$0xf]
    %v580 = vld [vmem:[%s565 + $0x38] sm:$0xf]
    %v581 = vld [vmem:[%s565 + $0x3c] sm:$0xf]
    %s582 = scalar_lea.vmem %s6, 1
    %v583 = vld [vmem:[%s582] sm:$0x1]
    %v585 = vlaneseq
    %v586 = vshrl.u32 %v585, 7
    %v587 = vsub.s32 0, %v586
    %v588 = vrot.slane %v583, %v587
    %v606 = vunpack.c.l.b16 %v566
    %v607 = vunpack.c.l.b16 %v567
    %v608 = vunpack.c.l.b16 %v568
    %v609 = vunpack.c.l.b16 %v569
    %v610 = vunpack.c.l.b16 %v570
    %v611 = vunpack.c.l.b16 %v571
    %v612 = vunpack.c.l.b16 %v572
    %v613 = vunpack.c.l.b16 %v573
    %v614 = vunpack.c.l.b16 %v574
    %v615 = vunpack.c.l.b16 %v575
    %v616 = vunpack.c.l.b16 %v576
    %v617 = vunpack.c.l.b16 %v577
    %v618 = vunpack.c.l.b16 %v578
    %v619 = vunpack.c.l.b16 %v579
    %v620 = vunpack.c.l.b16 %v580
    %v621 = vunpack.c.l.b16 %v581
    %v622 = vpack.c.b16 %v607, %v606
    %v623 = vpack.c.b16 %v609, %v608
    %v624 = vpack.c.b16 %v611, %v610
    %v625 = vpack.c.b16 %v613, %v612
    %v626 = vpack.c.b16 %v615, %v614
    %v627 = vpack.c.b16 %v617, %v616
    %v628 = vpack.c.b16 %v619, %v618
    %v629 = vpack.c.b16 %v621, %v620
    %638 = vmatprep.subr.bf16.mxu0 0
    %639 = vmatpush1.bf16.msra.mxu0 %v629
    %640 = vmatprep.subr.bf16.mxu0 0
    %641 = vmatpush1.bf16.msra.mxu0 %v628
    %642 = vmatprep.subr.bf16.mxu0 0
    %643 = vmatpush1.bf16.msra.mxu0 %v627
    %644 = vmatprep.subr.bf16.mxu0 0
    %645 = vmatpush1.bf16.msra.mxu0 %v626
    %646 = vmatprep.subr.bf16.mxu0 0
    %647 = vmatpush1.bf16.msra.mxu0 %v625
    %648 = vmatprep.subr.bf16.mxu0 0
    %649 = vmatpush1.bf16.msra.mxu0 %v624
    %650 = vmatprep.subr.bf16.mxu0 0
    %651 = vmatpush1.bf16.msra.mxu0 %v623
    %652 = vmatprep.subr.bf16.mxu0 0
    %653 = vmatpush1.bf16.msra.mxu0 %v622
    %654 = vmatprep.subr.bf16.mxu0 0
    %655 = vmatpush2.bf16.msra.mxu0 0
    %656 = vmatprep.subr.bf16.mxu0 0
    %657 = vmatpush2.bf16.msra.mxu0 0
    %658 = vmatprep.subr.bf16.mxu0 0
    %659 = vmatpush2.bf16.msra.mxu0 0
    %660 = vmatprep.subr.bf16.mxu0 0
    %661 = vmatpush2.bf16.msra.mxu0 0
    %662 = vmatprep.subr.bf16.mxu0 0
    %663 = vmatpush2.bf16.msra.mxu0 0
    %664 = vmatprep.subr.bf16.mxu0 0
    %665 = vmatpush2.bf16.msra.mxu0 0
    %666 = vmatprep.subr.bf16.mxu0 0
    %667 = vmatpush2.bf16.msra.mxu0 0
    %668 = vmatprep.subr.bf16.mxu0 0
    %669 = vmatpush2.bf16.msra.mxu0 0
    %670 = vmatprep.mubr.bf16.mxu0 0
    %671 = vmatmul.mubr.bf16.gmra.mxu0 %v564
    %v672 = vpop.f32.mrf.mxu0
    %v673 = vadd.f32 %v588, %v672
    %v674 = vpop.f32.mrf.mxu0
    %v675 = vpop.f32.mrf.mxu0
    %v676 = vadd.f32 %v588, %v675
    %v677 = vpop.f32.mrf.mxu0
    %678 = vdwg.mxu0
    %v679 = vadd.f32 %v673, %v676
    %v680 = vrot.slane %v679, 4
    %v681 = vadd.f32 %v679, %v680
    %v682 = vrot.slane %v681, 2
    %v683 = vadd.f32 %v681, %v682
    %v684 = vrot.slane %v683, 1
    %v685 = vadd.f32 %v683, %v684
    %v686 = vmul.f32 %v685, 0.0625
    %v687 = vmul.f32 %v673, %v673
    %v688 = vmul.f32 %v676, %v676
    %v689 = vadd.f32 %v687, %v688
    %v690 = vrot.slane %v689, 4
    %v691 = vadd.f32 %v689, %v690
    %v692 = vrot.slane %v691, 2
    %v693 = vadd.f32 %v691, %v692
    %v694 = vrot.slane %v693, 1
    %v695 = vadd.f32 %v693, %v694
    %v696 = vmul.f32 %v695, 0.0625
    %v697 = vmul.f32 %v686, %v686
    %v698 = vsub.f32 %v696, %v697
    %v699 = vmax.f32 %v698, 0.0
    %v700 = vsub.f32 %v673, %v686
    %v701 = vsub.f32 %v676, %v686
    %v702 = vadd.f32 %v699, 1e-05
    %v703 = vrsqrt.pop %v702
    %v704 = vmul.f32 %v700, %v703
    %v705 = vmul.f32 %v701, %v703
    %s706 = scalar_lea.vmem %s7, 1
    %v707 = vld [vmem:[%s706] sm:$0x1]
    %v709 = vlaneseq
    %v710 = vshrl.u32 %v709, 7
    %v711 = vsub.s32 0, %v710
    %v712 = vrot.slane %v707, %v711
    %v714 = vmul.f32 %v704, %v712
    %v715 = vmul.f32 %v705, %v712
    %s716 = scalar_lea.vmem %s8, 1
    %v717 = vld [vmem:[%s716] sm:$0x1]
    %v719 = vlaneseq
    %v720 = vshrl.u32 %v719, 7
    %v721 = vsub.s32 0, %v720
    %v722 = vrot.slane %v717, %v721
    %v724 = vadd.f32 %v714, %v722
    %v725 = vadd.f32 %v715, %v722
    %v726 = vmax.f32 %v724, 0.0
    %v727 = vmax.f32 %v725, 0.0
    %v728 = vpack.c.bf16 %v727, %v726
    %729 = vmatprep.subr.bf16.mxu0 0
    %730 = vmatpush1.bf16.msra.mxu0 0
    %731 = vmatprep.subr.bf16.mxu0 0
    %732 = vmatpush1.bf16.msra.mxu0 0
    %733 = vmatprep.subr.bf16.mxu0 0
    %734 = vmatpush1.bf16.msra.mxu0 0
    %735 = vmatprep.subr.bf16.mxu0 0
    %736 = vmatpush1.bf16.msra.mxu0 0
    %737 = vmatprep.subr.bf16.mxu0 0
    %738 = vmatpush1.bf16.msra.mxu0 0
    %739 = vmatprep.subr.bf16.mxu0 0
    %740 = vmatpush1.bf16.msra.mxu0 0
    %741 = vmatprep.subr.bf16.mxu0 0
    %742 = vmatpush1.bf16.msra.mxu0 0
    %743 = vmatprep.subr.bf16.mxu0 0
    %744 = vmatpush1.bf16.msra.mxu0 %v728
    %745 = vmatprep.subr.bf16.mxu0 0
    %746 = vmatpush2.bf16.msra.mxu0 0
    %747 = vmatprep.subr.bf16.mxu0 0
    %748 = vmatpush2.bf16.msra.mxu0 0
    %749 = vmatprep.subr.bf16.mxu0 0
    %750 = vmatpush2.bf16.msra.mxu0 0
    %751 = vmatprep.subr.bf16.mxu0 0
    %752 = vmatpush2.bf16.msra.mxu0 0
    %753 = vmatprep.subr.bf16.mxu0 0
    %754 = vmatpush2.bf16.msra.mxu0 0
    %755 = vmatprep.subr.bf16.mxu0 0
    %756 = vmatpush2.bf16.msra.mxu0 0
    %757 = vmatprep.subr.bf16.mxu0 0
    %758 = vmatpush2.bf16.msra.mxu0 0
    %759 = vmatprep.subr.bf16.mxu0 0
    %760 = vmatpush2.bf16.msra.mxu0 0
    %761 = vmatprep.mubr.bf16.mxu0 0
    %762 = vmatmul.mubr.bf16.gmra.mxu0 %v87
    %v763 = vpop.f32.mrf.mxu0
    %v764 = vadd.f32 0.0, %v763
    %v765 = vpop.f32.mrf.mxu0
    %v766 = vpop.f32.mrf.mxu0
    %v767 = vadd.f32 0.0, %v766
    %v768 = vpop.f32.mrf.mxu0
    %769 = vdwg.mxu0
    %v770 = vpack.c.bf16 %v767, %v764
    %s771 = scalar_lea.vmem [#allocation5], 128
    %v772 = vld [vmem:[%s771] sm:$0xf]
    %v773 = vld [vmem:[%s771 + $0x4] sm:$0xf]
    %v774 = vld [vmem:[%s771 + $0x8] sm:$0xf]
    %v775 = vld [vmem:[%s771 + $0xc] sm:$0xf]
    %v776 = vld [vmem:[%s771 + $0x10] sm:$0xf]
    %v777 = vld [vmem:[%s771 + $0x14] sm:$0xf]
    %v778 = vld [vmem:[%s771 + $0x18] sm:$0xf]
    %v779 = vld [vmem:[%s771 + $0x1c] sm:$0xf]
    %v780 = vld [vmem:[%s771 + $0x20] sm:$0xf]
    %v781 = vld [vmem:[%s771 + $0x24] sm:$0xf]
    %v782 = vld [vmem:[%s771 + $0x28] sm:$0xf]
    %v783 = vld [vmem:[%s771 + $0x2c] sm:$0xf]
    %v784 = vld [vmem:[%s771 + $0x30] sm:$0xf]
    %v785 = vld [vmem:[%s771 + $0x34] sm:$0xf]
    %v786 = vld [vmem:[%s771 + $0x38] sm:$0xf]
    %v787 = vld [vmem:[%s771 + $0x3c] sm:$0xf]
    %s788 = scalar_lea.vmem %s4, 2
    %v789 = vld [vmem:[%s788] sm:$0x1]
    %v791 = vlaneseq
    %v792 = vshrl.u32 %v791, 7
    %v793 = vsub.s32 0, %v792
    %v794 = vrot.slane %v789, %v793
    %v812 = vunpack.c.l.b16 %v772
    %v813 = vunpack.c.l.b16 %v773
    %v814 = vunpack.c.l.b16 %v774
    %v815 = vunpack.c.l.b16 %v775
    %v816 = vunpack.c.l.b16 %v776
    %v817 = vunpack.c.l.b16 %v777
    %v818 = vunpack.c.l.b16 %v778
    %v819 = vunpack.c.l.b16 %v779
    %v820 = vunpack.c.l.b16 %v780
    %v821 = vunpack.c.l.b16 %v781
    %v822 = vunpack.c.l.b16 %v782
    %v823 = vunpack.c.l.b16 %v783
    %v824 = vunpack.c.l.b16 %v784
    %v825 = vunpack.c.l.b16 %v785
    %v826 = vunpack.c.l.b16 %v786
    %v827 = vunpack.c.l.b16 %v787
    %v828 = vpack.c.b16 %v813, %v812
    %v829 = vpack.c.b16 %v815, %v814
    %v830 = vpack.c.b16 %v817, %v816
    %v831 = vpack.c.b16 %v819, %v818
    %v832 = vpack.c.b16 %v821, %v820
    %v833 = vpack.c.b16 %v823, %v822
    %v834 = vpack.c.b16 %v825, %v824
    %v835 = vpack.c.b16 %v827, %v826
    %844 = vmatprep.subr.bf16.mxu0 0
    %845 = vmatpush1.bf16.msra.mxu0 %v835
    %846 = vmatprep.subr.bf16.mxu0 0
    %847 = vmatpush1.bf16.msra.mxu0 %v834
    %848 = vmatprep.subr.bf16.mxu0 0
    %849 = vmatpush1.bf16.msra.mxu0 %v833
    %850 = vmatprep.subr.bf16.mxu0 0
    %851 = vmatpush1.bf16.msra.mxu0 %v832
    %852 = vmatprep.subr.bf16.mxu0 0
    %853 = vmatpush1.bf16.msra.mxu0 %v831
    %854 = vmatprep.subr.bf16.mxu0 0
    %855 = vmatpush1.bf16.msra.mxu0 %v830
    %856 = vmatprep.subr.bf16.mxu0 0
    %857 = vmatpush1.bf16.msra.mxu0 %v829
    %858 = vmatprep.subr.bf16.mxu0 0
    %859 = vmatpush1.bf16.msra.mxu0 %v828
    %860 = vmatprep.subr.bf16.mxu0 0
    %861 = vmatpush2.bf16.msra.mxu0 0
    %862 = vmatprep.subr.bf16.mxu0 0
    %863 = vmatpush2.bf16.msra.mxu0 0
    %864 = vmatprep.subr.bf16.mxu0 0
    %865 = vmatpush2.bf16.msra.mxu0 0
    %866 = vmatprep.subr.bf16.mxu0 0
    %867 = vmatpush2.bf16.msra.mxu0 0
    %868 = vmatprep.subr.bf16.mxu0 0
    %869 = vmatpush2.bf16.msra.mxu0 0
    %870 = vmatprep.subr.bf16.mxu0 0
    %871 = vmatpush2.bf16.msra.mxu0 0
    %872 = vmatprep.subr.bf16.mxu0 0
    %873 = vmatpush2.bf16.msra.mxu0 0
    %874 = vmatprep.subr.bf16.mxu0 0
    %875 = vmatpush2.bf16.msra.mxu0 0
    %876 = vmatprep.mubr.bf16.mxu0 0
    %877 = vmatmul.mubr.bf16.gmra.mxu0 %v770
    %v878 = vpop.f32.mrf.mxu0
    %v879 = vadd.f32 %v794, %v878
    %v880 = vpop.f32.mrf.mxu0
    %v881 = vpop.f32.mrf.mxu0
    %v882 = vadd.f32 %v794, %v881
    %v883 = vpop.f32.mrf.mxu0
    %884 = vdwg.mxu0
    %v885 = vmax.f32 %v879, 0.0
    %v886 = vmax.f32 %v882, 0.0
    %v887 = vpack.c.bf16 %v886, %v885
    %s888 = scalar_lea.vmem [#allocation7], 128
    %v889 = vld [vmem:[%s888] sm:$0xf]
    %v890 = vld [vmem:[%s888 + $0x4] sm:$0xf]
    %v891 = vld [vmem:[%s888 + $0x8] sm:$0xf]
    %v892 = vld [vmem:[%s888 + $0xc] sm:$0xf]
    %v893 = vld [vmem:[%s888 + $0x10] sm:$0xf]
    %v894 = vld [vmem:[%s888 + $0x14] sm:$0xf]
    %v895 = vld [vmem:[%s888 + $0x18] sm:$0xf]
    %v896 = vld [vmem:[%s888 + $0x1c] sm:$0xf]
    %v897 = vld [vmem:[%s888 + $0x20] sm:$0xf]
    %v898 = vld [vmem:[%s888 + $0x24] sm:$0xf]
    %v899 = vld [vmem:[%s888 + $0x28] sm:$0xf]
    %v900 = vld [vmem:[%s888 + $0x2c] sm:$0xf]
    %v901 = vld [vmem:[%s888 + $0x30] sm:$0xf]
    %v902 = vld [vmem:[%s888 + $0x34] sm:$0xf]
    %v903 = vld [vmem:[%s888 + $0x38] sm:$0xf]
    %v904 = vld [vmem:[%s888 + $0x3c] sm:$0xf]
    %s905 = scalar_lea.vmem %s6, 2
    %v906 = vld [vmem:[%s905] sm:$0x1]
    %v908 = vlaneseq
    %v909 = vshrl.u32 %v908, 7
    %v910 = vsub.s32 0, %v909
    %v911 = vrot.slane %v906, %v910
    %v929 = vunpack.c.l.b16 %v889
    %v930 = vunpack.c.l.b16 %v890
    %v931 = vunpack.c.l.b16 %v891
    %v932 = vunpack.c.l.b16 %v892
    %v933 = vunpack.c.l.b16 %v893
    %v934 = vunpack.c.l.b16 %v894
    %v935 = vunpack.c.l.b16 %v895
    %v936 = vunpack.c.l.b16 %v896
    %v937 = vunpack.c.l.b16 %v897
    %v938 = vunpack.c.l.b16 %v898
    %v939 = vunpack.c.l.b16 %v899
    %v940 = vunpack.c.l.b16 %v900
    %v941 = vunpack.c.l.b16 %v901
    %v942 = vunpack.c.l.b16 %v902
    %v943 = vunpack.c.l.b16 %v903
    %v944 = vunpack.c.l.b16 %v904
    %v945 = vpack.c.b16 %v930, %v929
    %v946 = vpack.c.b16 %v932, %v931
    %v947 = vpack.c.b16 %v934, %v933
    %v948 = vpack.c.b16 %v936, %v935
    %v949 = vpack.c.b16 %v938, %v937
    %v950 = vpack.c.b16 %v940, %v939
    %v951 = vpack.c.b16 %v942, %v941
    %v952 = vpack.c.b16 %v944, %v943
    %961 = vmatprep.subr.bf16.mxu0 0
    %962 = vmatpush1.bf16.msra.mxu0 %v952
    %963 = vmatprep.subr.bf16.mxu0 0
    %964 = vmatpush1.bf16.msra.mxu0 %v951
    %965 = vmatprep.subr.bf16.mxu0 0
    %966 = vmatpush1.bf16.msra.mxu0 %v950
    %967 = vmatprep.subr.bf16.mxu0 0
    %968 = vmatpush1.bf16.msra.mxu0 %v949
    %969 = vmatprep.subr.bf16.mxu0 0
    %970 = vmatpush1.bf16.msra.mxu0 %v948
    %971 = vmatprep.subr.bf16.mxu0 0
    %972 = vmatpush1.bf16.msra.mxu0 %v947
    %973 = vmatprep.subr.bf16.mxu0 0
    %974 = vmatpush1.bf16.msra.mxu0 %v946
    %975 = vmatprep.subr.bf16.mxu0 0
    %976 = vmatpush1.bf16.msra.mxu0 %v945
    %977 = vmatprep.subr.bf16.mxu0 0
    %978 = vmatpush2.bf16.msra.mxu0 0
    %979 = vmatprep.subr.bf16.mxu0 0
    %980 = vmatpush2.bf16.msra.mxu0 0
    %981 = vmatprep.subr.bf16.mxu0 0
    %982 = vmatpush2.bf16.msra.mxu0 0
    %983 = vmatprep.subr.bf16.mxu0 0
    %984 = vmatpush2.bf16.msra.mxu0 0
    %985 = vmatprep.subr.bf16.mxu0 0
    %986 = vmatpush2.bf16.msra.mxu0 0
    %987 = vmatprep.subr.bf16.mxu0 0
    %988 = vmatpush2.bf16.msra.mxu0 0
    %989 = vmatprep.subr.bf16.mxu0 0
    %990 = vmatpush2.bf16.msra.mxu0 0
    %991 = vmatprep.subr.bf16.mxu0 0
    %992 = vmatpush2.bf16.msra.mxu0 0
    %993 = vmatprep.mubr.bf16.mxu0 0
    %994 = vmatmul.mubr.bf16.gmra.mxu0 %v887
    %v995 = vpop.f32.mrf.mxu0
    %v996 = vadd.f32 %v911, %v995
    %v997 = vpop.f32.mrf.mxu0
    %v998 = vpop.f32.mrf.mxu0
    %v999 = vadd.f32 %v911, %v998
    %v1000 = vpop.f32.mrf.mxu0
    %1001 = vdwg.mxu0
    %v1002 = vadd.f32 %v996, %v999
    %v1003 = vrot.slane %v1002, 4
    %v1004 = vadd.f32 %v1002, %v1003
    %v1005 = vrot.slane %v1004, 2
    %v1006 = vadd.f32 %v1004, %v1005
    %v1007 = vrot.slane %v1006, 1
    %v1008 = vadd.f32 %v1006, %v1007
    %v1009 = vmul.f32 %v1008, 0.0625
    %v1010 = vmul.f32 %v996, %v996
    %v1011 = vmul.f32 %v999, %v999
    %v1012 = vadd.f32 %v1010, %v1011
    %v1013 = vrot.slane %v1012, 4
    %v1014 = vadd.f32 %v1012, %v1013
    %v1015 = vrot.slane %v1014, 2
    %v1016 = vadd.f32 %v1014, %v1015
    %v1017 = vrot.slane %v1016, 1
    %v1018 = vadd.f32 %v1016, %v1017
    %v1019 = vmul.f32 %v1018, 0.0625
    %v1020 = vmul.f32 %v1009, %v1009
    %v1021 = vsub.f32 %v1019, %v1020
    %v1022 = vmax.f32 %v1021, 0.0
    %v1023 = vsub.f32 %v996, %v1009
    %v1024 = vsub.f32 %v999, %v1009
    %v1025 = vadd.f32 %v1022, 1e-05
    %v1026 = vrsqrt.pop %v1025
    %v1027 = vmul.f32 %v1023, %v1026
    %v1028 = vmul.f32 %v1024, %v1026
    %s1029 = scalar_lea.vmem %s7, 2
    %v1030 = vld [vmem:[%s1029] sm:$0x1]
    %v1032 = vlaneseq
    %v1033 = vshrl.u32 %v1032, 7
    %v1034 = vsub.s32 0, %v1033
    %v1035 = vrot.slane %v1030, %v1034
    %v1037 = vmul.f32 %v1027, %v1035
    %v1038 = vmul.f32 %v1028, %v1035
    %s1039 = scalar_lea.vmem %s8, 2
    %v1040 = vld [vmem:[%s1039] sm:$0x1]
    %v1042 = vlaneseq
    %v1043 = vshrl.u32 %v1042, 7
    %v1044 = vsub.s32 0, %v1043
    %v1045 = vrot.slane %v1040, %v1044
    %v1047 = vadd.f32 %v1037, %v1045
    %v1048 = vadd.f32 %v1038, %v1045
    %v1049 = vmul.f32 %v1047, 0.2
    %v1050 = vmul.f32 %v1048, 0.2
    %v1051 = vld [vmem:[%s2] sm:$0xff]
    %v1052 = vld [vmem:[%s2 + $0x8] sm:$0xff]
    %vm1053 = vcmp.gt.f32.partialorder %v1051, 0.0
    %vm1054 = vcmp.gt.f32.partialorder %v1052, 0.0
    %1056 = vset.pattern.permute.xlu0 0
    %1057 = vperm.xlu0 %1056, %v1049
    %v1058 = vpop.permute.xlu0 %1057
    %1061 = vset.pattern.permute.xlu0 0
    %1062 = vperm.xlu0 %1061, %v1050
    %v1063 = vpop.permute.xlu0 %1062
    %v1065 = vsel %vm1053, %v1058, -1e+30
    %v1066 = vsel %vm1054, %v1063, -1e+30
    %vm1067 = vcmask 15360
    %v1068 = vsel %vm1067, %v1065, -inf
    %v1069 = vsel %vm1067, %v1066, -inf
    %v1070 = vmax.f32 %v1068, %v1069
    %v1071 = vrot.slane %v1070, 4
    %v1072 = vmax.f32 %v1070, %v1071
    %v1073 = vrot.slane %v1072, 2
    %v1074 = vmax.f32 %v1072, %v1073
    %v1075 = vrot.slane %v1074, 1
    %v1076 = vmax.f32 %v1074, %v1075
    %v1077 = vmul.f32 %v1051, %v1076
    %v1078 = vmul.f32 %v1052, %v1076
    %v1079 = vsel %vm1067, %v1077, 0.0
    %1080 = vadd.xlane.f32.xlu0 %v1079
    %v1081 = vpop.xlane.xlu0 %1080
    %v1082 = vsel %vm1067, %v1078, 0.0
    %1083 = vadd.xlane.f32.xlu0 %v1082
    %v1084 = vpop.xlane.xlu0 %1083
    %v1085 = vsub.f32 %v1049, %v1081
    %v1086 = vsub.f32 %v1050, %v1084
    %v1087 = vmul.f32 %v1085, 1.442695
    %v1088 = vpow.pop %v1087
    %v1089 = vmul.f32 %v1086, 1.442695
    %v1090 = vpow.pop %v1089
    %1091 = vxpose.xlu0.b32.start [1/16] %v1051, 128
    %1092 = vxpose.xlu0.b32.cont [2/16] %v1052, 128
    %1093 = vxpose.xlu0.b32.cont [3/16] 0.0, 128
    %1094 = vxpose.xlu0.b32.cont [4/16] 0.0, 128
    %1095 = vxpose.xlu0.b32.cont [5/16] 0.0, 128
    %1096 = vxpose.xlu0.b32.cont [6/16] 0.0, 128
    %1097 = vxpose.xlu0.b32.cont [7/16] 0.0, 128
    %1098 = vxpose.xlu0.b32.cont [8/16] 0.0, 128
    %1099 = vxpose.xlu0.b32.cont [9/16] 0.0, 128
    %1100 = vxpose.xlu0.b32.cont [10/16] 0.0, 128
    %1101 = vxpose.xlu0.b32.cont [11/16] 0.0, 128
    %1102 = vxpose.xlu0.b32.cont [12/16] 0.0, 128
    %1103 = vxpose.xlu0.b32.cont [13/16] 0.0, 128
    %1104 = vxpose.xlu0.b32.cont [14/16] 0.0, 128
    %1105 = vxpose.xlu0.b32.cont [15/16] 0.0, 128
    %1106 = vxpose.xlu0.b32.end [16/16] 0.0, 128
    %v1107 = vpop.trf.xlu0
    %v1108 = vpop.trf.xlu0
    %v1109 = vpop.trf.xlu0
    %v1110 = vpop.trf.xlu0
    %v1111 = vpop.trf.xlu0
    %v1112 = vpop.trf.xlu0
    %v1113 = vpop.trf.xlu0
    %v1114 = vpop.trf.xlu0
    %v1115 = vpop.trf.xlu0
    %v1116 = vpop.trf.xlu0
    %v1117 = vpop.trf.xlu0
    %v1118 = vpop.trf.xlu0
    %v1119 = vpop.trf.xlu0
    %v1120 = vpop.trf.xlu0
    %v1121 = vpop.trf.xlu0
    %v1122 = vpop.trf.xlu0
    %v1124 = vsel %vm85, %v1107, 0
    %1126 = vmatprep.subr.mxu0 0.0
    %1127 = vmatpush1.msra.mxu0 0.0
    %1128 = vmatprep.subr.mxu0 0.0
    %1129 = vmatpush1.msra.mxu0 0.0
    %1130 = vmatprep.subr.mxu0 0.0
    %1131 = vmatpush1.msra.mxu0 0.0
    %1132 = vmatprep.subr.mxu0 0.0
    %1133 = vmatpush1.msra.mxu0 0.0
    %1134 = vmatprep.subr.mxu0 0.0
    %1135 = vmatpush1.msra.mxu0 0.0
    %1136 = vmatprep.subr.mxu0 0.0
    %1137 = vmatpush1.msra.mxu0 0.0
    %1138 = vmatprep.subr.mxu0 0.0
    %1139 = vmatpush1.msra.mxu0 0.0
    %1140 = vmatprep.subr.mxu0 0.0
    %1141 = vmatpush1.msra.mxu0 0.0
    %1142 = vmatprep.subr.mxu0 0.0
    %1143 = vmatpush1.msra.mxu0 0.0
    %1144 = vmatprep.subr.mxu0 0.0
    %1145 = vmatpush1.msra.mxu0 0.0
    %1146 = vmatprep.subr.mxu0 0.0
    %1147 = vmatpush1.msra.mxu0 0.0
    %1148 = vmatprep.subr.mxu0 0.0
    %1149 = vmatpush1.msra.mxu0 0.0
    %1150 = vmatprep.subr.mxu0 0.0
    %1151 = vmatpush1.msra.mxu0 0.0
    %1152 = vmatprep.subr.mxu0 0.0
    %1153 = vmatpush1.msra.mxu0 0.0
    %1154 = vmatprep.subr.mxu0 0.0
    %1155 = vmatpush1.msra.mxu0 %v1090
    %1156 = vmatprep.subr.mxu0 0.0
    %1157 = vmatpush1.msra.mxu0 %v1088
    %1158 = vmatprep.subr.mxu0 0.0
    %1159 = vmatpush2.msra.mxu0 0.0
    %1160 = vmatprep.subr.mxu0 0.0
    %1161 = vmatpush2.msra.mxu0 0.0
    %1162 = vmatprep.subr.mxu0 0.0
    %1163 = vmatpush2.msra.mxu0 0.0
    %1164 = vmatprep.subr.mxu0 0.0
    %1165 = vmatpush2.msra.mxu0 0.0
    %1166 = vmatprep.subr.mxu0 0.0
    %1167 = vmatpush2.msra.mxu0 0.0
    %1168 = vmatprep.subr.mxu0 0.0
    %1169 = vmatpush2.msra.mxu0 0.0
    %1170 = vmatprep.subr.mxu0 0.0
    %1171 = vmatpush2.msra.mxu0 0.0
    %1172 = vmatprep.subr.mxu0 0.0
    %1173 = vmatpush2.msra.mxu0 0.0
    %1174 = vmatprep.subr.mxu0 0.0
    %1175 = vmatpush2.msra.mxu0 0.0
    %1176 = vmatprep.subr.mxu0 0.0
    %1177 = vmatpush2.msra.mxu0 0.0
    %1178 = vmatprep.subr.mxu0 0.0
    %1179 = vmatpush2.msra.mxu0 0.0
    %1180 = vmatprep.subr.mxu0 0.0
    %1181 = vmatpush2.msra.mxu0 0.0
    %1182 = vmatprep.subr.mxu0 0.0
    %1183 = vmatpush2.msra.mxu0 0.0
    %1184 = vmatprep.subr.mxu0 0.0
    %1185 = vmatpush2.msra.mxu0 0.0
    %1186 = vmatprep.subr.mxu0 0.0
    %1187 = vmatpush2.msra.mxu0 0.0
    %1188 = vmatprep.subr.mxu0 0.0
    %1189 = vmatpush2.msra.mxu0 0.0
    %1190 = vmatprep.mubr.f32.mxu0 0.0
    %1191 = vmatmul.mubr.f32.gmra.mxu0 %v1124
    %v1192 = vpop.f32.mrf.mxu0
    %v1193 = vadd.f32 0.0, %v1192
    %v1194 = vpop.f32.mrf.mxu0
    %1195 = vdwg.mxu0
    %v1197 = vsel %vm1067, %v1051, 0
    %v1200 = vsel %vm1067, %v1052, 0
    %vm1202 = vcmask 1041408
    %v1204 = vsel %vm1202, %v1193, 0
    %1206 = vmatprep.subr.mxu0 0.0
    %1207 = vmatpush1.msra.mxu0 0.0
    %1208 = vmatprep.subr.mxu0 0.0
    %1209 = vmatpush1.msra.mxu0 0.0
    %1210 = vmatprep.subr.mxu0 0.0
    %1211 = vmatpush1.msra.mxu0 0.0
    %1212 = vmatprep.subr.mxu0 0.0
    %1213 = vmatpush1.msra.mxu0 0.0
    %1214 = vmatprep.subr.mxu0 0.0
    %1215 = vmatpush1.msra.mxu0 0.0
    %1216 = vmatprep.subr.mxu0 0.0
    %1217 = vmatpush1.msra.mxu0 0.0
    %1218 = vmatprep.subr.mxu0 0.0
    %1219 = vmatpush1.msra.mxu0 0.0
    %1220 = vmatprep.subr.mxu0 0.0
    %1221 = vmatpush1.msra.mxu0 0.0
    %1222 = vmatprep.subr.mxu0 0.0
    %1223 = vmatpush1.msra.mxu0 0.0
    %1224 = vmatprep.subr.mxu0 0.0
    %1225 = vmatpush1.msra.mxu0 0.0
    %1226 = vmatprep.subr.mxu0 0.0
    %1227 = vmatpush1.msra.mxu0 0.0
    %1228 = vmatprep.subr.mxu0 0.0
    %1229 = vmatpush1.msra.mxu0 0.0
    %1230 = vmatprep.subr.mxu0 0.0
    %1231 = vmatpush1.msra.mxu0 0.0
    %1232 = vmatprep.subr.mxu0 0.0
    %1233 = vmatpush1.msra.mxu0 0.0
    %1234 = vmatprep.subr.mxu0 0.0
    %1235 = vmatpush1.msra.mxu0 0.0
    %1236 = vmatprep.subr.mxu0 0.0
    %1237 = vmatpush1.msra.mxu0 %v1204
    %1238 = vmatprep.subr.mxu0 0.0
    %1239 = vmatpush2.msra.mxu0 0.0
    %1240 = vmatprep.subr.mxu0 0.0
    %1241 = vmatpush2.msra.mxu0 0.0
    %1242 = vmatprep.subr.mxu0 0.0
    %1243 = vmatpush2.msra.mxu0 0.0
    %1244 = vmatprep.subr.mxu0 0.0
    %1245 = vmatpush2.msra.mxu0 0.0
    %1246 = vmatprep.subr.mxu0 0.0
    %1247 = vmatpush2.msra.mxu0 0.0
    %1248 = vmatprep.subr.mxu0 0.0
    %1249 = vmatpush2.msra.mxu0 0.0
    %1250 = vmatprep.subr.mxu0 0.0
    %1251 = vmatpush2.msra.mxu0 0.0
    %1252 = vmatprep.subr.mxu0 0.0
    %1253 = vmatpush2.msra.mxu0 0.0
    %1254 = vmatprep.subr.mxu0 0.0
    %1255 = vmatpush2.msra.mxu0 0.0
    %1256 = vmatprep.subr.mxu0 0.0
    %1257 = vmatpush2.msra.mxu0 0.0
    %1258 = vmatprep.subr.mxu0 0.0
    %1259 = vmatpush2.msra.mxu0 0.0
    %1260 = vmatprep.subr.mxu0 0.0
    %1261 = vmatpush2.msra.mxu0 0.0
    %1262 = vmatprep.subr.mxu0 0.0
    %1263 = vmatpush2.msra.mxu0 0.0
    %1264 = vmatprep.subr.mxu0 0.0
    %1265 = vmatpush2.msra.mxu0 0.0
    %1266 = vmatprep.subr.mxu0 0.0
    %1267 = vmatpush2.msra.mxu0 0.0
    %1268 = vmatprep.subr.mxu0 0.0
    %1269 = vmatpush2.msra.mxu0 0.0
    %1270 = vmatprep.mubr.f32.mxu0 0.0
    %1271 = vmatmul.mubr.f32.gmra.mxu0 %v1197
    %v1272 = vpop.f32.mrf.mxu0
    %v1273 = vadd.f32 1e-16, %v1272
    %v1274 = vpop.f32.mrf.mxu0
    %1275 = vmatprep.mubr.f32.mxu0 0.0
    %1276 = vmatmul.mubr.f32.gmra.mxu0 %v1200
    %v1277 = vpop.f32.mrf.mxu0
    %v1278 = vadd.f32 1e-16, %v1277
    %v1279 = vpop.f32.mrf.mxu0
    %1280 = vdwg.mxu0
    %v1281 = vrcp.pop %v1273
    %v1282 = vmul.f32 %v1088, %v1281
    %v1283 = vrcp.pop %v1278
    %v1284 = vmul.f32 %v1090, %v1283
    %1286 = vset.pattern.permute.xlu0 0
    %1287 = vperm.xlu0 %1286, %v1282
    %v1288 = vpop.permute.xlu0 %1287
    %1291 = vset.pattern.permute.xlu0 0
    %1292 = vperm.xlu0 %1291, %v1284
    %v1293 = vpop.permute.xlu0 %1292
    %1295 = vst [vmem:[#allocation8] sm:$0xff] %v1288
    %1296 = vst [vmem:[#allocation8 + $0x8] sm:$0xff] %v1293
    // Predicated region
    $region50: #{tpu_custom_call.1} parent=1 // pred_check
      _
    $region51: #{tpu_custom_call.1} parent=1 // pred_check_branch
      %1298 = sbr.rel (0) target = $region53
    $region52: #{tpu_custom_call.1} parent=1 // pred_region
      %s1300 = ssub.s32 256, 256
      %1301 = vsyncadd [#allocation4], %s1300
      %s1302 = sshll.u32 [#allocation8], 4
      %s1303 = int_to_ptr.vmem [resolvable:$true] %s1302
      %1308 = dma.vmem_to_hbm [thread:$0]  %s1303, 256, %s9, [#allocation4], 128, 128, 8
    $region53: #{tpu_custom_call.1} parent=1 // pred_fallthru
      _
    // Predicated region
    $region54: #{tpu_custom_call.1} parent=1 // pred_check
      _
    $region55: #{tpu_custom_call.1} parent=1 // pred_check_branch
      %1310 = sbr.rel (0) target = $region57
    $region56: #{tpu_custom_call.1} parent=1 // pred_region
      %1311 = dma.done [#allocation4], 256
    $region57: #{tpu_custom_call.1} parent=1 // pred_fallthru
      _
    %1312 = vsyncpa [#allocation3], 1
    %1313 = vsyncpa [#allocation6], 1
    %1314 = vsyncpa [#allocation4], 1

</llo_original>
